<compile_context>
chip_gen: v7x
topology: tpu7x:2x2x1
jax: 0.10.0
libtpu: 0.0.40
codegen_flags: <defaults>
</compile_context>

<pallas_src>
import math

import jax
import jax.numpy as jnp
from jax.experimental import pallas as pl
from jax.experimental.pallas import tpu as pltpu


def _round_up(x, m):
    return ((x + m - 1) // m) * m


# ----------------------------------------------------------------------------
# Kernel
# ----------------------------------------------------------------------------
def make_textcnn_kernel(filter_sizes, seq_len, vocab_pad, n_pad, group_pad,
                        c_pad):
    L = seq_len

    def kernel(ids_ref, table_ref, wbig_ref, cbias_ref, fcw_ref, fcb_ref,
               out_ref):
        n = ids_ref.shape[0]            # tb * L   (static)
        tb = n // L

        # --- Embedding gather fused in-kernel: one-hot bf16 MXU matmul ------
        ids = ids_ref[...]                                          # (n,1) i32
        iota = jax.lax.broadcasted_iota(jnp.int32, (n, vocab_pad), 1)
        onehot = jnp.where(ids == iota, 1.0, 0.0).astype(jnp.bfloat16)
        emb2d = jnp.dot(onehot, table_ref[...],
                        preferred_element_type=jnp.float32)          # (n,E_pad)

        # --- One wide bf16 MXU matmul for every (filter_size, tap) group ----
        s = jnp.dot(emb2d.astype(jnp.bfloat16), wbig_ref[...],
                    preferred_element_type=jnp.float32)              # (n,n_pad)
        s3 = s.reshape(tb, L, n_pad)    # free leading-dim split (n_pad%128==0)

        cbias = cbias_ref[...]                                 # (1, n_fs * GP)
        out_acc = jnp.zeros((tb, c_pad), jnp.float32)
        col = 0
        for idx, f in enumerate(filter_sizes):
            T = L - f + 1
            # Valid conv == sum of shifted per-tap contributions; every tap
            # group starts on a 128-lane boundary, so these slices are
            # lane-aligned (no XLU lane rotations / masked selects).
            acc = s3[:, 0:T, col:col + group_pad]
            for i in range(1, f):
                acc = acc + s3[:, i:i + T,
                               col + i * group_pad:col + (i + 1) * group_pad]
            col += f * group_pad
            # Folded conv-bias + BatchNorm2d beta, ReLU, MaxPool((T, 1)).
            bias = cbias[:, idx * group_pad:(idx + 1) * group_pad]    # (1, GP)
            acc = jnp.maximum(acc + bias[:, None, :], 0.0)            # (tb,T,GP)
            pooled = jnp.max(acc, axis=1)                             # (tb, GP)
            # FC as a sum of per-group partial dots (no concatenate of
            # 128-unaligned pooled pieces); padded lanes carry zero weights.
            out_acc = out_acc + jnp.dot(pooled.astype(jnp.bfloat16),
                                        fcw_ref[idx],
                                        preferred_element_type=jnp.float32)

        # Dropout (eval) = identity; BatchNorm1d folded into fc weights/bias.
        out_ref[...] = out_acc + fcb_ref[...]

    return kernel


# ----------------------------------------------------------------------------
# Host-side parameter folding / packing
# ----------------------------------------------------------------------------
def fold_and_pack_params(params, filter_sizes, num_filters, num_classes,
                         embed_size, vocab_size):
    """Fold eval-mode BNs into weights and pack everything lane-aligned."""
    eps = 1e-5
    bn_scale = 1.0 / math.sqrt(1.0 + eps)   # running_mean=0, running_var=1
    n_fs = len(filter_sizes)
    group_pad = _round_up(num_filters, 128)
    e_pad = _round_up(embed_size, 128)
    vocab_pad = _round_up(vocab_size, 128)
    c_pad = _round_up(num_classes, 128)
    n_pad = sum(filter_sizes) * group_pad

    table = jnp.zeros((vocab_pad, e_pad), jnp.float32)
    table = table.at[:vocab_size, :embed_size].set(params["embed"])

    w_big = jnp.zeros((e_pad, n_pad), jnp.float32)
    cbias = jnp.zeros((1, n_fs * group_pad), jnp.float32)
    col = 0
    for idx, f in enumerate(filter_sizes):
        scale = (params["bn2_g"][idx] * bn_scale).reshape(num_filters)  # (nf,)
        beta = params["bn2_b"][idx]                                     # (1,nf)
        w = params["conv_w"][idx] * scale[:, None, None]                # (nf,f,E)
        for i in range(f):
            w_big = w_big.at[:embed_size,
                             col + i * group_pad:
                             col + i * group_pad + num_filters].set(
                jnp.transpose(w[:, i, :]))                              # (E,nf)
        cbias = cbias.at[:, idx * group_pad:
                         idx * group_pad + num_filters].set(
            params["conv_b"][idx] * scale + beta)
        col += f * group_pad

    feat_dim = n_fs * num_filters
    s1 = (params["bn1_g"] * bn_scale).reshape(feat_dim)                 # (feat,)
    fc_w_sc = params["fc_w"] * s1[:, None]                              # (feat,C)
    fcw = jnp.zeros((n_fs, group_pad, c_pad), jnp.float32)
    for idx in range(n_fs):
        fcw = fcw.at[idx, :num_filters, :num_classes].set(
            fc_w_sc[idx * num_filters:(idx + 1) * num_filters, :])
    fcb = jnp.zeros((1, c_pad), jnp.float32)
    fcb = fcb.at[:, :num_classes].set(
        params["bn1_b"] @ params["fc_w"] + params["fc_b"])

    dims = dict(group_pad=group_pad, e_pad=e_pad, vocab_pad=vocab_pad,
                c_pad=c_pad, n_pad=n_pad)
    return (table.astype(jnp.bfloat16), w_big.astype(jnp.bfloat16),
            cbias.astype(jnp.float32), fcw.astype(jnp.bfloat16),
            fcb.astype(jnp.float32), dims)


# ----------------------------------------------------------------------------
# VMEM budgeting / batch-block selection
# ----------------------------------------------------------------------------
def _vmem_limit_bytes():
    """Per-generation VMEM limit: ~48 MiB-class on v7x (64 MiB physical),
    ~100 MiB on v5e/v6e (128 MiB physical)."""
    cap = 128 << 20
    try:
        cap = int(getattr(pltpu.get_tpu_info(), "vmem_capacity_bytes", cap))
    except Exception:
        pass
    return max(32 << 20, min(cap - (16 << 20), 100 << 20))


def _pick_batch_block(batch, step_bytes_fn, const_bytes, budget_bytes):
    """Largest power-of-two multiple-of-8 batch block whose real per-step
    footprint plus the resident constants fits the VMEM budget, capped so the
    grid keeps >= 2 steps when the batch allows (megacore sharding)."""
    batch8 = _round_up(max(batch, 8), 8)
    cap = batch8 if batch8 < 16 else batch8 // 2
    tb = 8
    while (tb * 2 <= cap and
           step_bytes_fn(tb * 2) + const_bytes <= budget_bytes):
        tb *= 2
    batch_pad = _round_up(batch8, tb)
    return tb, batch_pad


# ----------------------------------------------------------------------------
# Wrapper
# ----------------------------------------------------------------------------
def textcnn_forward(x_ids, params, *, filter_sizes, seq_len, embed_size,
                    num_filters, num_classes, vocab_size):
    if seq_len < max(filter_sizes):
        raise ValueError("seq_len must be >= max(filter_sizes)")
    batch = x_ids.shape[0]
    n_fs = len(filter_sizes)

    (table, w_big, cbias, fcw, fcb, dims) = fold_and_pack_params(
        params, filter_sizes, num_filters, num_classes, embed_size, vocab_size)
    group_pad, e_pad = dims["group_pad"], dims["e_pad"]
    vocab_pad, c_pad, n_pad = dims["vocab_pad"], dims["c_pad"], dims["n_pad"]

    vmem_limit = _vmem_limit_bytes()

    # TODO(synk): large-vocab path (per-row DMA gather with memory_space=pl.ANY)
    #             not implemented; the one-hot gather needs the table in VMEM.
    if vocab_pad * e_pad * 2 > vmem_limit // 4:
        raise NotImplementedError(
            "embedding table too large for the fused in-kernel gather path")

    # Resident constants are double-buffered blocks (index_map is constant).
    const_bytes = 2 * (table.size * 2 + w_big.size * 2 + cbias.size * 4 +
                       fcw.size * 2 + fcb.size * 4)

    def step_bytes(tb):
        n = tb * seq_len
        return (2 * n * 4                      # ids block  (x2 pipeline bufs)
                + 2 * tb * c_pad * 4           # out block  (x2 pipeline bufs)
                + n * vocab_pad * 2            # one-hot (bf16)
                + n * e_pad * (4 + 2)          # gathered emb f32 + bf16 copy
                + n * n_pad * 4                # wide matmul result (largest)
                + 3 * n * group_pad * 4)       # tap-combine temporaries

    tb, batch_pad = _pick_batch_block(batch, step_bytes, const_bytes,
                                      int(vmem_limit * 0.85))

    # Pad the batch to a multiple of the block (token 0 == zero padding row);
    # pass ids as a (B*L, 1) column so no in-kernel relayout is needed.
    ids = jnp.zeros((batch_pad, seq_len), jnp.int32)
    ids = ids.at[:batch].set(x_ids.astype(jnp.int32))
    ids2d = ids.reshape(batch_pad * seq_len, 1)

    grid = (batch_pad // tb,)
    kernel = make_textcnn_kernel(filter_sizes, seq_len, vocab_pad, n_pad,
                                 group_pad, c_pad)

    out = pl.pallas_call(
        kernel,
        out_shape=jax.ShapeDtypeStruct((batch_pad, c_pad), jnp.float32),
        grid=grid,
        in_specs=[
            pl.BlockSpec((tb * seq_len, 1), lambda b: (b, 0)),
            # Grid-constant operands below (index_map never changes).
            # TODO(synk): pipeline_mode=pl.Buffered(1) would halve their VMEM
            #             footprint; skipped to stay on the safest API surface.
            pl.BlockSpec((vocab_pad, e_pad), lambda b: (0, 0)),
            pl.BlockSpec((e_pad, n_pad), lambda b: (0, 0)),
            pl.BlockSpec((1, n_fs * group_pad), lambda b: (0, 0)),
            pl.BlockSpec((n_fs, group_pad, c_pad), lambda b: (0, 0, 0)),
            pl.BlockSpec((1, c_pad), lambda b: (0, 0)),
        ],
        out_specs=pl.BlockSpec((tb, c_pad), lambda b: (b, 0)),
        compiler_params=pltpu.CompilerParams(
            dimension_semantics=("parallel",),      # megacore / 2 TCs on v7x
            vmem_limit_bytes=int(vmem_limit)),
    )(ids2d, table, w_big, cbias, fcw, fcb)

    return out[:batch, :num_classes]


# ----------------------------------------------------------------------------
# Parameter init (mirrors TextCNN.init_weights) and pure-JAX reference
# ----------------------------------------------------------------------------
def init_params(key, *, vocab_size, embed_size, filter_sizes, num_filters,
                num_classes):
    n_fs = len(filter_sizes)
    keys = jax.random.split(key, 3 + 2 * n_fs)
    embed = jax.random.uniform(keys[0], (vocab_size, embed_size), jnp.float32,
                               -0.1, 0.1)
    embed = embed.at[0].set(0.0)  # padding row zeroed, as in init_weights()

    conv_w, conv_b, bn2_g, bn2_b = [], [], [], []
    for i, f in enumerate(filter_sizes):
        fan_in = 1 * f * embed_size
        fan_out = num_filters * f * embed_size
        std = math.sqrt(2.0 / (fan_in + fan_out)) * math.sqrt(2.0)  # xavier*sqrt2
        conv_w.append(std * jax.random.normal(
            keys[1 + 2 * i], (num_filters, f, embed_size), jnp.float32))
        conv_b.append(jnp.zeros((1, num_filters), jnp.float32))
        bn2_g.append(1.0 + 0.02 * jax.random.normal(
            keys[2 + 2 * i], (1, num_filters), jnp.float32))
        bn2_b.append(jnp.zeros((1, num_filters), jnp.float32))

    feat_dim = num_filters * n_fs
    fc_std = math.sqrt(2.0 / (feat_dim + num_classes))  # xavier_normal
    fc_w = fc_std * jax.random.normal(keys[-2], (feat_dim, num_classes),
                                      jnp.float32)  # stored pre-transposed
    fc_b = 0.01 * jax.random.normal(keys[-1], (1, num_classes), jnp.float32)

    return dict(embed=embed, conv_w=conv_w, conv_b=conv_b, bn2_g=bn2_g,
                bn2_b=bn2_b, bn1_g=jnp.ones((1, feat_dim), jnp.float32),
                bn1_b=jnp.zeros((1, feat_dim), jnp.float32),
                fc_w=fc_w, fc_b=fc_b)


def textcnn_ref(x_ids, params, *, filter_sizes, seq_len, num_filters):
    """Pure-JAX f32 reference with identical (inference-mode) semantics."""
    eps = 1e-5
    emb = params["embed"][x_ids].astype(jnp.float32)
    pooled = []
    for idx, f in enumerate(filter_sizes):
        w = params["conv_w"][idx]
        T = seq_len - f + 1
        acc = jnp.zeros((x_ids.shape[0], T, num_filters), jnp.float32)
        for i in range(f):
            acc = acc + jnp.einsum("bte,ce->btc", emb[:, i:i + T, :], w[:, i, :])
        acc = acc + params["conv_b"][idx].reshape(1, 1, -1)
        acc = acc * (params["bn2_g"][idx].reshape(1, 1, -1) / jnp.sqrt(1.0 + eps))
        acc = acc + params["bn2_b"][idx].reshape(1, 1, -1)
        acc = jnp.maximum(acc, 0.0)
        pooled.append(jnp.max(acc, axis=1))
    feat = jnp.concatenate(pooled, axis=-1)
    feat = feat * (params["bn1_g"] / jnp.sqrt(1.0 + eps)) + params["bn1_b"]
    return feat @ params["fc_w"] + params["fc_b"]


if __name__ == "__main__":
    import numpy as np

    seq_len, num_classes, vocab_size, embed_size = 8, 4, 20, 32
    filter_sizes, num_filters = (2, 3, 4), 8
    batch = 2

    key = jax.random.PRNGKey(0)
    kp, kx = jax.random.split(key)
    params = init_params(kp, vocab_size=vocab_size, embed_size=embed_size,
                         filter_sizes=filter_sizes, num_filters=num_filters,
                         num_classes=num_classes)
    x = jax.random.randint(kx, (batch, seq_len), 0, vocab_size, dtype=jnp.int32)

    out = textcnn_forward(x, params, filter_sizes=filter_sizes, seq_len=seq_len,
                          embed_size=embed_size, num_filters=num_filters,
                          num_classes=num_classes, vocab_size=vocab_size)
    out = jax.block_until_ready(out)

    ref = textcnn_ref(x, params, filter_sizes=filter_sizes, seq_len=seq_len,
                      num_filters=num_filters)
    assert out.shape == (batch, num_classes)
    # Tolerance relaxed vs the f32 reference: kernel matmul inputs are bf16.
    np.testing.assert_allclose(np.asarray(out), np.asarray(ref),
                               rtol=5e-2, atol=1e-2)
    print("KERNEL_OK")
</pallas_src>

<mosaic_0001>
module attributes {stable_mosaic.version = 11 : i64} {
  func.func @kernel(%arg0: i32, %arg1: memref<64x1xi32, #tpu.memory_space<vmem>>, %arg2: memref<128x128xbf16, #tpu.memory_space<vmem>>, %arg3: memref<128x1152xbf16, #tpu.memory_space<vmem>>, %arg4: memref<1x384xf32, #tpu.memory_space<vmem>>, %arg5: memref<3x128x128xbf16, #tpu.memory_space<vmem>>, %arg6: memref<1x128xf32, #tpu.memory_space<vmem>>, %arg7: memref<8x128xf32, #tpu.memory_space<vmem>>) attributes {dimension_semantics = [#tpu.dimension_semantics<parallel>], iteration_bounds = array<i64: 1>, scalar_prefetch = 0 : i64, scratch_operands = 0 : i64, tpu.core_type = #tpu.core_type<tc>, window_params = [{transform_indices = @transform_0, window_bounds = array<i64: 64, 1>}, {pipeline_mode = #tpu.pipeline_mode<synchronous>, transform_indices = @transform_1, window_bounds = array<i64: 128, 128>}, {pipeline_mode = #tpu.pipeline_mode<synchronous>, transform_indices = @transform_2, window_bounds = array<i64: 128, 1152>}, {pipeline_mode = #tpu.pipeline_mode<synchronous>, transform_indices = @transform_3, window_bounds = array<i64: 1, 384>}, {pipeline_mode = #tpu.pipeline_mode<synchronous>, transform_indices = @transform_4, window_bounds = array<i64: 3, 128, 128>}, {pipeline_mode = #tpu.pipeline_mode<synchronous>, transform_indices = @transform_5, window_bounds = array<i64: 1, 128>}, {transform_indices = @transform_6, window_bounds = array<i64: 8, 128>}]} {
    %c0 = arith.constant 0 : index
    %c0_0 = arith.constant 0 : index
    %0 = vector.load %arg1[%c0, %c0_0] : memref<64x1xi32, #tpu.memory_space<vmem>>, vector<64x1xi32>
    %1 = tpu.iota {dimensions = array<i32: 1>} : vector<64x128xi32>
    %2 = vector.broadcast %0 : vector<64x1xi32> to vector<64x128xi32>
    %3 = arith.cmpi eq, %2, %1 : vector<64x128xi32>
    %cst = arith.constant 1.000000e+00 : f32
    %cst_1 = arith.constant 0.000000e+00 : f32
    %4 = vector.broadcast %cst : f32 to vector<64x128xf32>
    %5 = vector.broadcast %cst_1 : f32 to vector<64x128xf32>
    %6 = arith.select %3, %4, %5 : vector<64x128xi1>, vector<64x128xf32>
    %7 = arith.truncf %6 : vector<64x128xf32> to vector<64x128xbf16>
    %c0_2 = arith.constant 0 : index
    %c0_3 = arith.constant 0 : index
    %8 = vector.load %arg2[%c0_2, %c0_3] : memref<128x128xbf16, #tpu.memory_space<vmem>>, vector<128x128xbf16>
    %cst_4 = arith.constant dense<0.000000e+00> : vector<64x128xf32>
    %9 = tpu.matmul %7, %8, %cst_4 {dimension_numbers = #tpu.dot_dimension_numbers<[1], [0], [0], [1], [0, 0, 1, 1], [], []>} : vector<64x128xbf16>, vector<128x128xbf16>, vector<64x128xf32> -> vector<64x128xf32>
    %10 = arith.truncf %9 : vector<64x128xf32> to vector<64x128xbf16>
    %c0_5 = arith.constant 0 : index
    %c0_6 = arith.constant 0 : index
    %11 = vector.load %arg3[%c0_5, %c0_6] : memref<128x1152xbf16, #tpu.memory_space<vmem>>, vector<128x1152xbf16>
    %cst_7 = arith.constant dense<0.000000e+00> : vector<64x1152xf32>
    %12 = tpu.matmul %10, %11, %cst_7 {dimension_numbers = #tpu.dot_dimension_numbers<[1], [0], [0], [1], [0, 0, 1, 1], [], []>} : vector<64x128xbf16>, vector<128x1152xbf16>, vector<64x1152xf32> -> vector<64x1152xf32>
    %13 = vector.shape_cast %12 : vector<64x1152xf32> to vector<8x8x1152xf32>
    %c0_8 = arith.constant 0 : index
    %c0_9 = arith.constant 0 : index
    %14 = vector.load %arg4[%c0_8, %c0_9] : memref<1x384xf32, #tpu.memory_space<vmem>>, vector<1x384xf32>
    %cst_10 = arith.constant 0.000000e+00 : f32
    %15 = vector.broadcast %cst_10 : f32 to vector<8x128xf32>
    %16 = vector.extract_strided_slice %13 {offsets = [0, 0, 0], sizes = [8, 7, 128], strides = [1, 1, 1]} : vector<8x8x1152xf32> to vector<8x7x128xf32>
    %17 = vector.extract_strided_slice %13 {offsets = [0, 1, 128], sizes = [8, 7, 128], strides = [1, 1, 1]} : vector<8x8x1152xf32> to vector<8x7x128xf32>
    %18 = arith.addf %16, %17 : vector<8x7x128xf32>
    %19 = vector.extract_strided_slice %14 {offsets = [0, 0], sizes = [1, 128], strides = [1, 1]} : vector<1x384xf32> to vector<1x128xf32>
    %20 = vector.shape_cast %19 : vector<1x128xf32> to vector<1x1x128xf32>
    %21 = vector.broadcast %20 : vector<1x1x128xf32> to vector<8x7x128xf32>
    %22 = arith.addf %18, %21 : vector<8x7x128xf32>
    %cst_11 = arith.constant 0.000000e+00 : f32
    %23 = vector.broadcast %cst_11 : f32 to vector<8x7x128xf32>
    %24 = arith.maximumf %22, %23 : vector<8x7x128xf32>
    %cst_12 = arith.constant dense<0xFF800000> : vector<8x128xf32>
    %25 = vector.multi_reduction <maximumf>, %24, %cst_12 [1] : vector<8x7x128xf32> to vector<8x128xf32>
    %26 = arith.truncf %25 : vector<8x128xf32> to vector<8x128xbf16>
    %c0_13 = arith.constant 0 : index
    %c0_14 = arith.constant 0 : index
    %c0_15 = arith.constant 0 : index
    %27 = vector.load %arg5[%c0_13, %c0_14, %c0_15] : memref<3x128x128xbf16, #tpu.memory_space<vmem>>, vector<1x128x128xbf16>
    %28 = vector.shape_cast %27 : vector<1x128x128xbf16> to vector<128x128xbf16>
    %cst_16 = arith.constant dense<0.000000e+00> : vector<8x128xf32>
    %29 = tpu.matmul %26, %28, %cst_16 {dimension_numbers = #tpu.dot_dimension_numbers<[1], [0], [0], [1], [0, 0, 1, 1], [], []>} : vector<8x128xbf16>, vector<128x128xbf16>, vector<8x128xf32> -> vector<8x128xf32>
    %30 = arith.addf %15, %29 : vector<8x128xf32>
    %31 = vector.extract_strided_slice %13 {offsets = [0, 0, 256], sizes = [8, 6, 128], strides = [1, 1, 1]} : vector<8x8x1152xf32> to vector<8x6x128xf32>
    %32 = vector.extract_strided_slice %13 {offsets = [0, 1, 384], sizes = [8, 6, 128], strides = [1, 1, 1]} : vector<8x8x1152xf32> to vector<8x6x128xf32>
    %33 = arith.addf %31, %32 : vector<8x6x128xf32>
    %34 = vector.extract_strided_slice %13 {offsets = [0, 2, 512], sizes = [8, 6, 128], strides = [1, 1, 1]} : vector<8x8x1152xf32> to vector<8x6x128xf32>
    %35 = arith.addf %33, %34 : vector<8x6x128xf32>
    %36 = vector.extract_strided_slice %14 {offsets = [0, 128], sizes = [1, 128], strides = [1, 1]} : vector<1x384xf32> to vector<1x128xf32>
    %37 = vector.shape_cast %36 : vector<1x128xf32> to vector<1x1x128xf32>
    %38 = vector.broadcast %37 : vector<1x1x128xf32> to vector<8x6x128xf32>
    %39 = arith.addf %35, %38 : vector<8x6x128xf32>
    %cst_17 = arith.constant 0.000000e+00 : f32
    %40 = vector.broadcast %cst_17 : f32 to vector<8x6x128xf32>
    %41 = arith.maximumf %39, %40 : vector<8x6x128xf32>
    %cst_18 = arith.constant dense<0xFF800000> : vector<8x128xf32>
    %42 = vector.multi_reduction <maximumf>, %41, %cst_18 [1] : vector<8x6x128xf32> to vector<8x128xf32>
    %43 = arith.truncf %42 : vector<8x128xf32> to vector<8x128xbf16>
    %c1 = arith.constant 1 : index
    %c0_19 = arith.constant 0 : index
    %c0_20 = arith.constant 0 : index
    %44 = vector.load %arg5[%c1, %c0_19, %c0_20] : memref<3x128x128xbf16, #tpu.memory_space<vmem>>, vector<1x128x128xbf16>
    %45 = vector.shape_cast %44 : vector<1x128x128xbf16> to vector<128x128xbf16>
    %cst_21 = arith.constant dense<0.000000e+00> : vector<8x128xf32>
    %46 = tpu.matmul %43, %45, %cst_21 {dimension_numbers = #tpu.dot_dimension_numbers<[1], [0], [0], [1], [0, 0, 1, 1], [], []>} : vector<8x128xbf16>, vector<128x128xbf16>, vector<8x128xf32> -> vector<8x128xf32>
    %47 = arith.addf %30, %46 : vector<8x128xf32>
    %48 = vector.extract_strided_slice %13 {offsets = [0, 0, 640], sizes = [8, 5, 128], strides = [1, 1, 1]} : vector<8x8x1152xf32> to vector<8x5x128xf32>
    %49 = vector.extract_strided_slice %13 {offsets = [0, 1, 768], sizes = [8, 5, 128], strides = [1, 1, 1]} : vector<8x8x1152xf32> to vector<8x5x128xf32>
    %50 = arith.addf %48, %49 : vector<8x5x128xf32>
    %51 = vector.extract_strided_slice %13 {offsets = [0, 2, 896], sizes = [8, 5, 128], strides = [1, 1, 1]} : vector<8x8x1152xf32> to vector<8x5x128xf32>
    %52 = arith.addf %50, %51 : vector<8x5x128xf32>
    %53 = vector.extract_strided_slice %13 {offsets = [0, 3, 1024], sizes = [8, 5, 128], strides = [1, 1, 1]} : vector<8x8x1152xf32> to vector<8x5x128xf32>
    %54 = arith.addf %52, %53 : vector<8x5x128xf32>
    %55 = vector.extract_strided_slice %14 {offsets = [0, 256], sizes = [1, 128], strides = [1, 1]} : vector<1x384xf32> to vector<1x128xf32>
    %56 = vector.shape_cast %55 : vector<1x128xf32> to vector<1x1x128xf32>
    %57 = vector.broadcast %56 : vector<1x1x128xf32> to vector<8x5x128xf32>
    %58 = arith.addf %54, %57 : vector<8x5x128xf32>
    %cst_22 = arith.constant 0.000000e+00 : f32
    %59 = vector.broadcast %cst_22 : f32 to vector<8x5x128xf32>
    %60 = arith.maximumf %58, %59 : vector<8x5x128xf32>
    %cst_23 = arith.constant dense<0xFF800000> : vector<8x128xf32>
    %61 = vector.multi_reduction <maximumf>, %60, %cst_23 [1] : vector<8x5x128xf32> to vector<8x128xf32>
    %62 = arith.truncf %61 : vector<8x128xf32> to vector<8x128xbf16>
    %c2 = arith.constant 2 : index
    %c0_24 = arith.constant 0 : index
    %c0_25 = arith.constant 0 : index
    %63 = vector.load %arg5[%c2, %c0_24, %c0_25] : memref<3x128x128xbf16, #tpu.memory_space<vmem>>, vector<1x128x128xbf16>
    %64 = vector.shape_cast %63 : vector<1x128x128xbf16> to vector<128x128xbf16>
    %cst_26 = arith.constant dense<0.000000e+00> : vector<8x128xf32>
    %65 = tpu.matmul %62, %64, %cst_26 {dimension_numbers = #tpu.dot_dimension_numbers<[1], [0], [0], [1], [0, 0, 1, 1], [], []>} : vector<8x128xbf16>, vector<128x128xbf16>, vector<8x128xf32> -> vector<8x128xf32>
    %66 = arith.addf %47, %65 : vector<8x128xf32>
    %c0_27 = arith.constant 0 : index
    %c0_28 = arith.constant 0 : index
    %67 = vector.load %arg6[%c0_27, %c0_28] : memref<1x128xf32, #tpu.memory_space<vmem>>, vector<1x128xf32>
    %68 = vector.broadcast %67 : vector<1x128xf32> to vector<8x128xf32>
    %69 = arith.addf %66, %68 : vector<8x128xf32>
    %c0_29 = arith.constant 0 : index
    %c0_30 = arith.constant 0 : index
    %70 = vector.load %arg7[%c0_29, %c0_30] : memref<8x128xf32, #tpu.memory_space<vmem>>, vector<8x128xf32>
    tpu.vector_store %arg7[%c0_29, %c0_30], %69 {strides = array<i32>} : memref<8x128xf32, #tpu.memory_space<vmem>>, vector<8x128xf32>,
    return
  }
  func.func @transform_0(%arg0: i32) -> (i32, i32) {
    %c0_i32 = arith.constant 0 : i32
    %c0_i32_0 = arith.constant 0 : i32
    return %arg0, %c0_i32 : i32, i32
  }
  func.func @transform_1(%arg0: i32) -> (i32, i32) {
    %c0_i32 = arith.constant 0 : i32
    %c0_i32_0 = arith.constant 0 : i32
    %c0_i32_1 = arith.constant 0 : i32
    return %c0_i32, %c0_i32_0 : i32, i32
  }
  func.func @transform_2(%arg0: i32) -> (i32, i32) {
    %c0_i32 = arith.constant 0 : i32
    %c0_i32_0 = arith.constant 0 : i32
    %c0_i32_1 = arith.constant 0 : i32
    return %c0_i32, %c0_i32_0 : i32, i32
  }
  func.func @transform_3(%arg0: i32) -> (i32, i32) {
    %c0_i32 = arith.constant 0 : i32
    %c0_i32_0 = arith.constant 0 : i32
    %c0_i32_1 = arith.constant 0 : i32
    return %c0_i32, %c0_i32_0 : i32, i32
  }
  func.func @transform_4(%arg0: i32) -> (i32, i32, i32) {
    %c0_i32 = arith.constant 0 : i32
    %c0_i32_0 = arith.constant 0 : i32
    %c0_i32_1 = arith.constant 0 : i32
    %c0_i32_2 = arith.constant 0 : i32
    return %c0_i32, %c0_i32_0, %c0_i32_1 : i32, i32, i32
  }
  func.func @transform_5(%arg0: i32) -> (i32, i32) {
    %c0_i32 = arith.constant 0 : i32
    %c0_i32_0 = arith.constant 0 : i32
    %c0_i32_1 = arith.constant 0 : i32
    return %c0_i32, %c0_i32_0 : i32, i32
  }
  func.func @transform_6(%arg0: i32) -> (i32, i32) {
    %c0_i32 = arith.constant 0 : i32
    %c0_i32_0 = arith.constant 0 : i32
    return %arg0, %c0_i32 : i32, i32
  }
}

</mosaic_0001>

<llo_original>
// kernel: tpu_custom_call.1
$region0: #{tpu_custom_call.1}
  #allocation0 [shape = 'u32[]', space=smem, size = 0x4, offset = 0x4, fixed_abs, tag = 'smem constant byte address 0x4 - core index']
  #allocation1 [shape = 'u32[144,128]{1,0:T(1,128)}', space=vmem, size = 0x12000, scoped, tag = 'internal scratch']
  %s0 = inlined_call_operand.hbm [shape: s32[64,1], index: 0, kind: input, shape index: {}]
  %s1 = inlined_call_operand.hbm [shape: bf16[128,128], index: 1, kind: input, shape index: {}]
  %s2 = inlined_call_operand.hbm [shape: bf16[128,1152], index: 2, kind: input, shape index: {}]
  %s3 = inlined_call_operand.hbm [shape: f32[1,384], index: 3, kind: input, shape index: {}]
  %s4 = inlined_call_operand.hbm [shape: bf16[3,128,128], index: 4, kind: input, shape index: {}]
  %s5 = inlined_call_operand.hbm [shape: f32[1,128], index: 5, kind: input, shape index: {}]
  %s6 = inlined_call_operand.hbm [shape: f32[8,128], index: 6, kind: output, shape index: {}]
  %s7 = sld [smem:[#allocation0]]
  $region58: #{tpu_custom_call.1} parent=0
    _
  %s9 = ssub.s32 1, %s7
  %s10 = scalar_select 0, %s9, %s7
  $region1: #{tpu_custom_call.1} parent=0
    #allocation2 [shape = 'u8[32768]{0}', space=vmem, size = 0x8000, scoped, tag = 'input window, operand 0, single buffered']
    #allocation3 [shape = 's32[1]{0}', space=sflag, size = 0x4, scoped, tag = 'scoped memory for tpu_custom_call.1']
    #allocation4 [shape = 's32[1]{0}', space=sflag, size = 0x4, scoped, tag = 'scoped memory for tpu_custom_call.1']
    #allocation5 [shape = 'u8[32768]{0}', space=vmem, size = 0x8000, scoped, tag = 'input window, operand 1, single buffered']
    #allocation6 [shape = 's32[1]{0}', space=sflag, size = 0x4, scoped, tag = 'scoped memory for tpu_custom_call.1']
    #allocation7 [shape = 'u8[294912]{0}', space=vmem, size = 0x48000, scoped, tag = 'input window, operand 2, single buffered']
    #allocation8 [shape = 'u8[1536]{0}', space=vmem, size = 0x800, scoped, tag = 'input window, operand 3, single buffered']
    #allocation9 [shape = 's32[1]{0}', space=sflag, size = 0x4, scoped, tag = 'scoped memory for tpu_custom_call.1']
    #allocation10 [shape = 'u8[98304]{0}', space=vmem, size = 0x18000, scoped, tag = 'input window, operand 4, single buffered']
    #allocation11 [shape = 'u8[512]{0}', space=vmem, size = 0x400, scoped, tag = 'input window, operand 5, single buffered']
    #allocation12 [shape = 's32[1]{0}', space=sflag, size = 0x4, scoped, tag = 'scoped memory for tpu_custom_call.1']
    #allocation13 [shape = 'u8[4096]{0}', space=vmem, size = 0x1000, scoped, tag = 'output window, operand 0, single buffered']
    %11 = vsyncpa [#allocation3], 0
    %12 = vsyncpa [#allocation6], 0
    %13 = vsyncpa [#allocation9], 0
    %14 = vsyncpa [#allocation12], 0
    %15 = vsyncpa [#allocation4], 0
    // Predicated region
    $region2: #{tpu_custom_call.1} parent=1 // pred_check
      _
    $region3: #{tpu_custom_call.1} parent=1 // pred_check_branch
      %17 = sbr.rel (0) target = $region5
    $region4: #{tpu_custom_call.1} parent=1 // pred_region
      %s19 = ssub.s32 1024, 1024
      %20 = vsyncadd [#allocation3], %s19
      %s21 = sshll.u32 [#allocation2], 4
      %s22 = int_to_ptr.vmem [resolvable:$true] %s21
      %27 = dma.hbm_to_vmem [thread:$0]  %s0, 1024, %s22, [#allocation3], 128, 128, 8
    $region5: #{tpu_custom_call.1} parent=1 // pred_fallthru
      _
    // Predicated region
    $region6: #{tpu_custom_call.1} parent=1 // pred_check
      _
    $region7: #{tpu_custom_call.1} parent=1 // pred_check_branch
      %29 = sbr.rel (0) target = $region9
    $region8: #{tpu_custom_call.1} parent=1 // pred_region
      %s31 = ssub.s32 1024, 1024
      %32 = vsyncadd [#allocation6], %s31
      %s33 = sshll.u32 [#allocation5], 4
      %s34 = int_to_ptr.vmem [resolvable:$true] %s33
      %39 = dma.hbm_to_vmem [thread:$0]  %s1, 1024, %s34, [#allocation6], 64, 64, 4
    $region9: #{tpu_custom_call.1} parent=1 // pred_fallthru
      _
    // Predicated region
    $region10: #{tpu_custom_call.1} parent=1 // pred_check
      _
    $region11: #{tpu_custom_call.1} parent=1 // pred_check_branch
      %41 = sbr.rel (0) target = $region13
    $region12: #{tpu_custom_call.1} parent=1 // pred_region
      %s43 = ssub.s32 9216, 9216
      %44 = vsyncadd [#allocation6], %s43
      %s45 = sshll.u32 [#allocation7], 4
      %s46 = int_to_ptr.vmem [resolvable:$true] %s45
      %51 = dma.hbm_to_vmem [thread:$0]  %s2, 9216, %s46, [#allocation6], 576, 576, 36
    $region13: #{tpu_custom_call.1} parent=1 // pred_fallthru
      _
    // Predicated region
    $region14: #{tpu_custom_call.1} parent=1 // pred_check
      _
    $region15: #{tpu_custom_call.1} parent=1 // pred_check_branch
      %53 = sbr.rel (0) target = $region17
    $region16: #{tpu_custom_call.1} parent=1 // pred_region
      %s55 = ssub.s32 48, 48
      %56 = vsyncadd [#allocation9], %s55
      %s58 = sshll.u32 [#allocation8], 4
      %s59 = int_to_ptr.vmem [resolvable:$true] %s58
      %61 = dma.hbm_to_vmem [thread:$0]  %s3, 48, %s59, [#allocation9]
    $region17: #{tpu_custom_call.1} parent=1 // pred_fallthru
      _
    // Predicated region
    $region18: #{tpu_custom_call.1} parent=1 // pred_check
      _
    $region19: #{tpu_custom_call.1} parent=1 // pred_check_branch
      %63 = sbr.rel (0) target = $region21
    $region20: #{tpu_custom_call.1} parent=1 // pred_region
      %s65 = ssub.s32 3072, 3072
      %66 = vsyncadd [#allocation9], %s65
      %s67 = sshll.u32 [#allocation10], 4
      %s68 = int_to_ptr.vmem [resolvable:$true] %s67
      %73 = dma.hbm_to_vmem [thread:$0]  %s4, 3072, %s68, [#allocation9], 64, 64, 4
    $region21: #{tpu_custom_call.1} parent=1 // pred_fallthru
      _
    // Predicated region
    $region22: #{tpu_custom_call.1} parent=1 // pred_check
      _
    $region23: #{tpu_custom_call.1} parent=1 // pred_check_branch
      %75 = sbr.rel (0) target = $region25
    $region24: #{tpu_custom_call.1} parent=1 // pred_region
      %s77 = ssub.s32 16, 16
      %78 = vsyncadd [#allocation12], %s77
      %s80 = sshll.u32 [#allocation11], 4
      %s81 = int_to_ptr.vmem [resolvable:$true] %s80
      %83 = dma.hbm_to_vmem [thread:$0]  %s5, 16, %s81, [#allocation12]
    $region25: #{tpu_custom_call.1} parent=1 // pred_fallthru
      _
    // Predicated region
    $region26: #{tpu_custom_call.1} parent=1 // pred_check
      _
    $region27: #{tpu_custom_call.1} parent=1 // pred_check_branch
      %85 = sbr.rel (0) target = $region29
    $region28: #{tpu_custom_call.1} parent=1 // pred_region
      %86 = dma.done [#allocation3], 1024
    $region29: #{tpu_custom_call.1} parent=1 // pred_fallthru
      _
    // Predicated region
    $region30: #{tpu_custom_call.1} parent=1 // pred_check
      _
    $region31: #{tpu_custom_call.1} parent=1 // pred_check_branch
      %88 = sbr.rel (0) target = $region33
    $region32: #{tpu_custom_call.1} parent=1 // pred_region
      %89 = dma.done [#allocation6], 1024
    $region33: #{tpu_custom_call.1} parent=1 // pred_fallthru
      _
    // Predicated region
    $region34: #{tpu_custom_call.1} parent=1 // pred_check
      _
    $region35: #{tpu_custom_call.1} parent=1 // pred_check_branch
      %91 = sbr.rel (0) target = $region37
    $region36: #{tpu_custom_call.1} parent=1 // pred_region
      %92 = dma.done [#allocation6], 9216
    $region37: #{tpu_custom_call.1} parent=1 // pred_fallthru
      _
    // Predicated region
    $region38: #{tpu_custom_call.1} parent=1 // pred_check
      _
    $region39: #{tpu_custom_call.1} parent=1 // pred_check_branch
      %94 = sbr.rel (0) target = $region41
    $region40: #{tpu_custom_call.1} parent=1 // pred_region
      %95 = dma.done [#allocation9], 48
    $region41: #{tpu_custom_call.1} parent=1 // pred_fallthru
      _
    // Predicated region
    $region42: #{tpu_custom_call.1} parent=1 // pred_check
      _
    $region43: #{tpu_custom_call.1} parent=1 // pred_check_branch
      %97 = sbr.rel (0) target = $region45
    $region44: #{tpu_custom_call.1} parent=1 // pred_region
      %98 = dma.done [#allocation9], 3072
    $region45: #{tpu_custom_call.1} parent=1 // pred_fallthru
      _
    // Predicated region
    $region46: #{tpu_custom_call.1} parent=1 // pred_check
      _
    $region47: #{tpu_custom_call.1} parent=1 // pred_check_branch
      %100 = sbr.rel (0) target = $region49
    $region48: #{tpu_custom_call.1} parent=1 // pred_region
      %101 = dma.done [#allocation12], 16
    $region49: #{tpu_custom_call.1} parent=1 // pred_fallthru
      _
    %v103 = vld [vmem:[#allocation2] sm:$0xff]
    %v104 = vld [vmem:[#allocation2 + $0x8] sm:$0xff]
    %v105 = vld [vmem:[#allocation2 + $0x10] sm:$0xff]
    %v106 = vld [vmem:[#allocation2 + $0x18] sm:$0xff]
    %v107 = vld [vmem:[#allocation2 + $0x20] sm:$0xff]
    %v108 = vld [vmem:[#allocation2 + $0x28] sm:$0xff]
    %v109 = vld [vmem:[#allocation2 + $0x30] sm:$0xff]
    %v110 = vld [vmem:[#allocation2 + $0x38] sm:$0xff]
    %v111 = vlaneseq
    %v112 = vand.u32 %v111, 127
    %113 = vset.pattern.permute.xlu0 0
    %114 = vperm.xlu0 %113, %v103
    %v115 = vpop.permute.xlu0 %114
    %116 = vset.pattern.permute.xlu0 0
    %117 = vperm.xlu0 %116, %v104
    %v118 = vpop.permute.xlu0 %117
    %119 = vset.pattern.permute.xlu0 0
    %120 = vperm.xlu0 %119, %v105
    %v121 = vpop.permute.xlu0 %120
    %122 = vset.pattern.permute.xlu0 0
    %123 = vperm.xlu0 %122, %v106
    %v124 = vpop.permute.xlu0 %123
    %125 = vset.pattern.permute.xlu0 0
    %126 = vperm.xlu0 %125, %v107
    %v127 = vpop.permute.xlu0 %126
    %128 = vset.pattern.permute.xlu0 0
    %129 = vperm.xlu0 %128, %v108
    %v130 = vpop.permute.xlu0 %129
    %131 = vset.pattern.permute.xlu0 0
    %132 = vperm.xlu0 %131, %v109
    %v133 = vpop.permute.xlu0 %132
    %134 = vset.pattern.permute.xlu0 0
    %135 = vperm.xlu0 %134, %v110
    %v136 = vpop.permute.xlu0 %135
    %vm137 = vcmp.eq.s32.totalorder %v115, %v112
    %vm138 = vcmp.eq.s32.totalorder %v118, %v112
    %vm139 = vcmp.eq.s32.totalorder %v121, %v112
    %vm140 = vcmp.eq.s32.totalorder %v124, %v112
    %vm141 = vcmp.eq.s32.totalorder %v127, %v112
    %vm142 = vcmp.eq.s32.totalorder %v130, %v112
    %vm143 = vcmp.eq.s32.totalorder %v133, %v112
    %vm144 = vcmp.eq.s32.totalorder %v136, %v112
    %v145 = vsel %vm137, 1.0, 0.0
    %v146 = vsel %vm138, 1.0, 0.0
    %v147 = vsel %vm139, 1.0, 0.0
    %v148 = vsel %vm140, 1.0, 0.0
    %v149 = vsel %vm141, 1.0, 0.0
    %v150 = vsel %vm142, 1.0, 0.0
    %v151 = vsel %vm143, 1.0, 0.0
    %v152 = vsel %vm144, 1.0, 0.0
    %v153 = vpack.c.bf16 %v146, %v145
    %v154 = vpack.c.bf16 %v148, %v147
    %v155 = vpack.c.bf16 %v150, %v149
    %v156 = vpack.c.bf16 %v152, %v151
    %v157 = vld [vmem:[#allocation5] sm:$0xf]
    %v158 = vld [vmem:[#allocation5 + $0x4] sm:$0xf]
    %v159 = vld [vmem:[#allocation5 + $0x8] sm:$0xf]
    %v160 = vld [vmem:[#allocation5 + $0xc] sm:$0xf]
    %v161 = vld [vmem:[#allocation5 + $0x10] sm:$0xf]
    %v162 = vld [vmem:[#allocation5 + $0x14] sm:$0xf]
    %v163 = vld [vmem:[#allocation5 + $0x18] sm:$0xf]
    %v164 = vld [vmem:[#allocation5 + $0x1c] sm:$0xf]
    %v165 = vld [vmem:[#allocation5 + $0x20] sm:$0xf]
    %v166 = vld [vmem:[#allocation5 + $0x24] sm:$0xf]
    %v167 = vld [vmem:[#allocation5 + $0x28] sm:$0xf]
    %v168 = vld [vmem:[#allocation5 + $0x2c] sm:$0xf]
    %v169 = vld [vmem:[#allocation5 + $0x30] sm:$0xf]
    %v170 = vld [vmem:[#allocation5 + $0x34] sm:$0xf]
    %v171 = vld [vmem:[#allocation5 + $0x38] sm:$0xf]
    %v172 = vld [vmem:[#allocation5 + $0x3c] sm:$0xf]
    %v189 = vunpack.c.l.b16 %v157
    %v190 = vunpack.c.l.b16 %v158
    %v191 = vunpack.c.l.b16 %v159
    %v192 = vunpack.c.l.b16 %v160
    %v193 = vunpack.c.l.b16 %v161
    %v194 = vunpack.c.l.b16 %v162
    %v195 = vunpack.c.l.b16 %v163
    %v196 = vunpack.c.l.b16 %v164
    %v197 = vunpack.c.l.b16 %v165
    %v198 = vunpack.c.l.b16 %v166
    %v199 = vunpack.c.l.b16 %v167
    %v200 = vunpack.c.l.b16 %v168
    %v201 = vunpack.c.l.b16 %v169
    %v202 = vunpack.c.l.b16 %v170
    %v203 = vunpack.c.l.b16 %v171
    %v204 = vunpack.c.l.b16 %v172
    %v205 = vpack.c.b16 %v190, %v189
    %v206 = vpack.c.b16 %v192, %v191
    %v207 = vpack.c.b16 %v194, %v193
    %v208 = vpack.c.b16 %v196, %v195
    %v209 = vpack.c.b16 %v198, %v197
    %v210 = vpack.c.b16 %v200, %v199
    %v211 = vpack.c.b16 %v202, %v201
    %v212 = vpack.c.b16 %v204, %v203
    %221 = vmatprep.subr.bf16.mxu0 0
    %222 = vmatpush1.bf16.msra.mxu0 %v205
    %223 = vmatprep.subr.bf16.mxu0 0
    %224 = vmatpush1.bf16.msra.mxu0 %v206
    %225 = vmatprep.subr.bf16.mxu0 0
    %226 = vmatpush1.bf16.msra.mxu0 %v207
    %227 = vmatprep.subr.bf16.mxu0 0
    %228 = vmatpush1.bf16.msra.mxu0 %v208
    %229 = vmatprep.subr.bf16.mxu0 0
    %230 = vmatpush1.bf16.msra.mxu0 %v209
    %231 = vmatprep.subr.bf16.mxu0 0
    %232 = vmatpush1.bf16.msra.mxu0 %v210
    %233 = vmatprep.subr.bf16.mxu0 0
    %234 = vmatpush1.bf16.msra.mxu0 %v211
    %235 = vmatprep.subr.bf16.mxu0 0
    %236 = vmatpush1.bf16.msra.mxu0 %v212
    %237 = vmatprep.subr.bf16.mxu0 0
    %238 = vmatpush1.bf16.msra.mxu0 0
    %239 = vmatprep.subr.bf16.mxu0 0
    %240 = vmatpush1.bf16.msra.mxu0 0
    %241 = vmatprep.subr.bf16.mxu0 0
    %242 = vmatpush1.bf16.msra.mxu0 0
    %243 = vmatprep.subr.bf16.mxu0 0
    %244 = vmatpush1.bf16.msra.mxu0 0
    %245 = vmatprep.subr.bf16.mxu0 0
    %246 = vmatpush1.bf16.msra.mxu0 0
    %247 = vmatprep.subr.bf16.mxu0 0
    %248 = vmatpush1.bf16.msra.mxu0 0
    %249 = vmatprep.subr.bf16.mxu0 0
    %250 = vmatpush1.bf16.msra.mxu0 0
    %251 = vmatprep.subr.bf16.mxu0 0
    %252 = vmatpush1.bf16.msra.mxu0 0
    %253 = vmatprep.mubr.bf16.mxu0 0
    %254 = vmatmul.mubr.bf16.gmra.mrb[0].mxu0 %v153
    %v255 = vpop.f32.mrb[0].mxu0
    %v256 = vadd.f32 0.0, %v255
    %v257 = vpop.f32.mrb[0].mxu0
    %v258 = vpop.f32.mrb[0].mxu0
    %v259 = vadd.f32 0.0, %v258
    %v260 = vpop.f32.mrb[0].mxu0
    %261 = vmatprep.mubr.bf16.mxu0 0
    %262 = vmatmul.mubr.bf16.gmra.mrb[0].mxu0 %v154
    %v263 = vpop.f32.mrb[0].mxu0
    %v264 = vadd.f32 0.0, %v263
    %v265 = vpop.f32.mrb[0].mxu0
    %v266 = vpop.f32.mrb[0].mxu0
    %v267 = vadd.f32 0.0, %v266
    %v268 = vpop.f32.mrb[0].mxu0
    %269 = vmatprep.mubr.bf16.mxu0 0
    %270 = vmatmul.mubr.bf16.gmra.mrb[0].mxu0 %v155
    %v271 = vpop.f32.mrb[0].mxu0
    %v272 = vadd.f32 0.0, %v271
    %v273 = vpop.f32.mrb[0].mxu0
    %v274 = vpop.f32.mrb[0].mxu0
    %v275 = vadd.f32 0.0, %v274
    %v276 = vpop.f32.mrb[0].mxu0
    %277 = vmatprep.mubr.bf16.mxu0 0
    %278 = vmatmul.mubr.bf16.gmra.mrb[0].mxu0 %v156
    %v279 = vpop.f32.mrb[0].mxu0
    %v280 = vadd.f32 0.0, %v279
    %v281 = vpop.f32.mrb[0].mxu0
    %v282 = vpop.f32.mrb[0].mxu0
    %v283 = vadd.f32 0.0, %v282
    %v284 = vpop.f32.mrb[0].mxu0
    %285 = vdwg.mxu0
    %v286 = vpack.c.bf16 %v259, %v256
    %v287 = vpack.c.bf16 %v267, %v264
    %v288 = vpack.c.bf16 %v275, %v272
    %v289 = vpack.c.bf16 %v283, %v280
    %v290 = vld [vmem:[#allocation7] sm:$0xff]
    %v291 = vld [vmem:[#allocation7 + $0x8] sm:$0xff]
    %v292 = vld [vmem:[#allocation7 + $0x10] sm:$0xff]
    %v293 = vld [vmem:[#allocation7 + $0x18] sm:$0xff]
    %v294 = vld [vmem:[#allocation7 + $0x20] sm:$0xf]
    %v295 = vld [vmem:[#allocation7 + $0x24] sm:$0xff]
    %v296 = vld [vmem:[#allocation7 + $0x2c] sm:$0xff]
    %v297 = vld [vmem:[#allocation7 + $0x34] sm:$0xff]
    %v298 = vld [vmem:[#allocation7 + $0x3c] sm:$0xff]
    %v299 = vld [vmem:[#allocation7 + $0x44] sm:$0xf]
    %v300 = vld [vmem:[#allocation7 + $0x48] sm:$0xff]
    %v301 = vld [vmem:[#allocation7 + $0x50] sm:$0xff]
    %v302 = vld [vmem:[#allocation7 + $0x58] sm:$0xff]
    %v303 = vld [vmem:[#allocation7 + $0x60] sm:$0xff]
    %v304 = vld [vmem:[#allocation7 + $0x68] sm:$0xf]
    %v305 = vld [vmem:[#allocation7 + $0x6c] sm:$0xff]
    %v306 = vld [vmem:[#allocation7 + $0x74] sm:$0xff]
    %v307 = vld [vmem:[#allocation7 + $0x7c] sm:$0xff]
    %v308 = vld [vmem:[#allocation7 + $0x84] sm:$0xff]
    %v309 = vld [vmem:[#allocation7 + $0x8c] sm:$0xf]
    %v310 = vld [vmem:[#allocation7 + $0x90] sm:$0xff]
    %v311 = vld [vmem:[#allocation7 + $0x98] sm:$0xff]
    %v312 = vld [vmem:[#allocation7 + $0xa0] sm:$0xff]
    %v313 = vld [vmem:[#allocation7 + $0xa8] sm:$0xff]
    %v314 = vld [vmem:[#allocation7 + $0xb0] sm:$0xf]
    %v315 = vld [vmem:[#allocation7 + $0xb4] sm:$0xff]
    %v316 = vld [vmem:[#allocation7 + $0xbc] sm:$0xff]
    %v317 = vld [vmem:[#allocation7 + $0xc4] sm:$0xff]
    %v318 = vld [vmem:[#allocation7 + $0xcc] sm:$0xff]
    %v319 = vld [vmem:[#allocation7 + $0xd4] sm:$0xf]
    %v320 = vld [vmem:[#allocation7 + $0xd8] sm:$0xff]
    %v321 = vld [vmem:[#allocation7 + $0xe0] sm:$0xff]
    %v322 = vld [vmem:[#allocation7 + $0xe8] sm:$0xff]
    %v323 = vld [vmem:[#allocation7 + $0xf0] sm:$0xff]
    %v324 = vld [vmem:[#allocation7 + $0xf8] sm:$0xf]
    %v325 = vld [vmem:[#allocation7 + $0xfc] sm:$0xff]
    %v326 = vld [vmem:[#allocation7 + $0x104] sm:$0xff]
    %v327 = vld [vmem:[#allocation7 + $0x10c] sm:$0xff]
    %v328 = vld [vmem:[#allocation7 + $0x114] sm:$0xff]
    %v329 = vld [vmem:[#allocation7 + $0x11c] sm:$0xf]
    %v330 = vld [vmem:[#allocation7 + $0x120] sm:$0xff]
    %v331 = vld [vmem:[#allocation7 + $0x128] sm:$0xff]
    %v332 = vld [vmem:[#allocation7 + $0x130] sm:$0xff]
    %v333 = vld [vmem:[#allocation7 + $0x138] sm:$0xff]
    %v334 = vld [vmem:[#allocation7 + $0x140] sm:$0xf]
    %v335 = vld [vmem:[#allocation7 + $0x144] sm:$0xff]
    %v336 = vld [vmem:[#allocation7 + $0x14c] sm:$0xff]
    %v337 = vld [vmem:[#allocation7 + $0x154] sm:$0xff]
    %v338 = vld [vmem:[#allocation7 + $0x15c] sm:$0xff]
    %v339 = vld [vmem:[#allocation7 + $0x164] sm:$0xf]
    %v340 = vld [vmem:[#allocation7 + $0x168] sm:$0xff]
    %v341 = vld [vmem:[#allocation7 + $0x170] sm:$0xff]
    %v342 = vld [vmem:[#allocation7 + $0x178] sm:$0xff]
    %v343 = vld [vmem:[#allocation7 + $0x180] sm:$0xff]
    %v344 = vld [vmem:[#allocation7 + $0x188] sm:$0xf]
    %v345 = vld [vmem:[#allocation7 + $0x18c] sm:$0xff]
    %v346 = vld [vmem:[#allocation7 + $0x194] sm:$0xff]
    %v347 = vld [vmem:[#allocation7 + $0x19c] sm:$0xff]
    %v348 = vld [vmem:[#allocation7 + $0x1a4] sm:$0xff]
    %v349 = vld [vmem:[#allocation7 + $0x1ac] sm:$0xf]
    %v350 = vld [vmem:[#allocation7 + $0x1b0] sm:$0xff]
    %v351 = vld [vmem:[#allocation7 + $0x1b8] sm:$0xff]
    %v352 = vld [vmem:[#allocation7 + $0x1c0] sm:$0xff]
    %v353 = vld [vmem:[#allocation7 + $0x1c8] sm:$0xff]
    %v354 = vld [vmem:[#allocation7 + $0x1d0] sm:$0xf]
    %v355 = vld [vmem:[#allocation7 + $0x1d4] sm:$0xff]
    %v356 = vld [vmem:[#allocation7 + $0x1dc] sm:$0xff]
    %v357 = vld [vmem:[#allocation7 + $0x1e4] sm:$0xff]
    %v358 = vld [vmem:[#allocation7 + $0x1ec] sm:$0xff]
    %v359 = vld [vmem:[#allocation7 + $0x1f4] sm:$0xf]
    %v360 = vld [vmem:[#allocation7 + $0x1f8] sm:$0xff]
    %v361 = vld [vmem:[#allocation7 + $0x200] sm:$0xff]
    %v362 = vld [vmem:[#allocation7 + $0x208] sm:$0xff]
    %v363 = vld [vmem:[#allocation7 + $0x210] sm:$0xff]
    %v364 = vld [vmem:[#allocation7 + $0x218] sm:$0xf]
    %v365 = vld [vmem:[#allocation7 + $0x21c] sm:$0xff]
    %v366 = vld [vmem:[#allocation7 + $0x224] sm:$0xff]
    %v367 = vld [vmem:[#allocation7 + $0x22c] sm:$0xff]
    %v368 = vld [vmem:[#allocation7 + $0x234] sm:$0xff]
    %v369 = vld [vmem:[#allocation7 + $0x23c] sm:$0xf]
    %v450 = vunpack.c.l.b16 %v290
    %v451 = vunpack.c.h.b16 %v290
    %v452 = vunpack.c.l.b16 %v291
    %v453 = vunpack.c.h.b16 %v291
    %v454 = vunpack.c.l.b16 %v292
    %v455 = vunpack.c.h.b16 %v292
    %v456 = vunpack.c.l.b16 %v293
    %v457 = vunpack.c.h.b16 %v293
    %v458 = vunpack.c.l.b16 %v294
    %v459 = vunpack.c.l.b16 %v295
    %v460 = vunpack.c.h.b16 %v295
    %v461 = vunpack.c.l.b16 %v296
    %v462 = vunpack.c.h.b16 %v296
    %v463 = vunpack.c.l.b16 %v297
    %v464 = vunpack.c.h.b16 %v297
    %v465 = vunpack.c.l.b16 %v298
    %v466 = vunpack.c.h.b16 %v298
    %v467 = vunpack.c.l.b16 %v299
    %v468 = vunpack.c.l.b16 %v300
    %v469 = vunpack.c.h.b16 %v300
    %v470 = vunpack.c.l.b16 %v301
    %v471 = vunpack.c.h.b16 %v301
    %v472 = vunpack.c.l.b16 %v302
    %v473 = vunpack.c.h.b16 %v302
    %v474 = vunpack.c.l.b16 %v303
    %v475 = vunpack.c.h.b16 %v303
    %v476 = vunpack.c.l.b16 %v304
    %v477 = vunpack.c.l.b16 %v305
    %v478 = vunpack.c.h.b16 %v305
    %v479 = vunpack.c.l.b16 %v306
    %v480 = vunpack.c.h.b16 %v306
    %v481 = vunpack.c.l.b16 %v307
    %v482 = vunpack.c.h.b16 %v307
    %v483 = vunpack.c.l.b16 %v308
    %v484 = vunpack.c.h.b16 %v308
    %v485 = vunpack.c.l.b16 %v309
    %v486 = vunpack.c.l.b16 %v310
    %v487 = vunpack.c.h.b16 %v310
    %v488 = vunpack.c.l.b16 %v311
    %v489 = vunpack.c.h.b16 %v311
    %v490 = vunpack.c.l.b16 %v312
    %v491 = vunpack.c.h.b16 %v312
    %v492 = vunpack.c.l.b16 %v313
    %v493 = vunpack.c.h.b16 %v313
    %v494 = vunpack.c.l.b16 %v314
    %v495 = vunpack.c.l.b16 %v315
    %v496 = vunpack.c.h.b16 %v315
    %v497 = vunpack.c.l.b16 %v316
    %v498 = vunpack.c.h.b16 %v316
    %v499 = vunpack.c.l.b16 %v317
    %v500 = vunpack.c.h.b16 %v317
    %v501 = vunpack.c.l.b16 %v318
    %v502 = vunpack.c.h.b16 %v318
    %v503 = vunpack.c.l.b16 %v319
    %v504 = vunpack.c.l.b16 %v320
    %v505 = vunpack.c.h.b16 %v320
    %v506 = vunpack.c.l.b16 %v321
    %v507 = vunpack.c.h.b16 %v321
    %v508 = vunpack.c.l.b16 %v322
    %v509 = vunpack.c.h.b16 %v322
    %v510 = vunpack.c.l.b16 %v323
    %v511 = vunpack.c.h.b16 %v323
    %v512 = vunpack.c.l.b16 %v324
    %v513 = vunpack.c.l.b16 %v325
    %v514 = vunpack.c.h.b16 %v325
    %v515 = vunpack.c.l.b16 %v326
    %v516 = vunpack.c.h.b16 %v326
    %v517 = vunpack.c.l.b16 %v327
    %v518 = vunpack.c.h.b16 %v327
    %v519 = vunpack.c.l.b16 %v328
    %v520 = vunpack.c.h.b16 %v328
    %v521 = vunpack.c.l.b16 %v329
    %v522 = vunpack.c.l.b16 %v330
    %v523 = vunpack.c.h.b16 %v330
    %v524 = vunpack.c.l.b16 %v331
    %v525 = vunpack.c.h.b16 %v331
    %v526 = vunpack.c.l.b16 %v332
    %v527 = vunpack.c.h.b16 %v332
    %v528 = vunpack.c.l.b16 %v333
    %v529 = vunpack.c.h.b16 %v333
    %v530 = vunpack.c.l.b16 %v334
    %v531 = vunpack.c.l.b16 %v335
    %v532 = vunpack.c.h.b16 %v335
    %v533 = vunpack.c.l.b16 %v336
    %v534 = vunpack.c.h.b16 %v336
    %v535 = vunpack.c.l.b16 %v337
    %v536 = vunpack.c.h.b16 %v337
    %v537 = vunpack.c.l.b16 %v338
    %v538 = vunpack.c.h.b16 %v338
    %v539 = vunpack.c.l.b16 %v339
    %v540 = vunpack.c.l.b16 %v340
    %v541 = vunpack.c.h.b16 %v340
    %v542 = vunpack.c.l.b16 %v341
    %v543 = vunpack.c.h.b16 %v341
    %v544 = vunpack.c.l.b16 %v342
    %v545 = vunpack.c.h.b16 %v342
    %v546 = vunpack.c.l.b16 %v343
    %v547 = vunpack.c.h.b16 %v343
    %v548 = vunpack.c.l.b16 %v344
    %v549 = vunpack.c.l.b16 %v345
    %v550 = vunpack.c.h.b16 %v345
    %v551 = vunpack.c.l.b16 %v346
    %v552 = vunpack.c.h.b16 %v346
    %v553 = vunpack.c.l.b16 %v347
    %v554 = vunpack.c.h.b16 %v347
    %v555 = vunpack.c.l.b16 %v348
    %v556 = vunpack.c.h.b16 %v348
    %v557 = vunpack.c.l.b16 %v349
    %v558 = vunpack.c.l.b16 %v350
    %v559 = vunpack.c.h.b16 %v350
    %v560 = vunpack.c.l.b16 %v351
    %v561 = vunpack.c.h.b16 %v351
    %v562 = vunpack.c.l.b16 %v352
    %v563 = vunpack.c.h.b16 %v352
    %v564 = vunpack.c.l.b16 %v353
    %v565 = vunpack.c.h.b16 %v353
    %v566 = vunpack.c.l.b16 %v354
    %v567 = vunpack.c.l.b16 %v355
    %v568 = vunpack.c.h.b16 %v355
    %v569 = vunpack.c.l.b16 %v356
    %v570 = vunpack.c.h.b16 %v356
    %v571 = vunpack.c.l.b16 %v357
    %v572 = vunpack.c.h.b16 %v357
    %v573 = vunpack.c.l.b16 %v358
    %v574 = vunpack.c.h.b16 %v358
    %v575 = vunpack.c.l.b16 %v359
    %v576 = vunpack.c.l.b16 %v360
    %v577 = vunpack.c.h.b16 %v360
    %v578 = vunpack.c.l.b16 %v361
    %v579 = vunpack.c.h.b16 %v361
    %v580 = vunpack.c.l.b16 %v362
    %v581 = vunpack.c.h.b16 %v362
    %v582 = vunpack.c.l.b16 %v363
    %v583 = vunpack.c.h.b16 %v363
    %v584 = vunpack.c.l.b16 %v364
    %v585 = vunpack.c.l.b16 %v365
    %v586 = vunpack.c.h.b16 %v365
    %v587 = vunpack.c.l.b16 %v366
    %v588 = vunpack.c.h.b16 %v366
    %v589 = vunpack.c.l.b16 %v367
    %v590 = vunpack.c.h.b16 %v367
    %v591 = vunpack.c.l.b16 %v368
    %v592 = vunpack.c.h.b16 %v368
    %v593 = vunpack.c.l.b16 %v369
    %v594 = vpack.c.b16 %v459, %v450
    %v595 = vpack.c.b16 %v460, %v451
    %v596 = vpack.c.b16 %v461, %v452
    %v597 = vpack.c.b16 %v462, %v453
    %v598 = vpack.c.b16 %v463, %v454
    %v599 = vpack.c.b16 %v464, %v455
    %v600 = vpack.c.b16 %v465, %v456
    %v601 = vpack.c.b16 %v466, %v457
    %v602 = vpack.c.b16 %v467, %v458
    %v603 = vpack.c.b16 %v477, %v468
    %v604 = vpack.c.b16 %v478, %v469
    %v605 = vpack.c.b16 %v479, %v470
    %v606 = vpack.c.b16 %v480, %v471
    %v607 = vpack.c.b16 %v481, %v472
    %v608 = vpack.c.b16 %v482, %v473
    %v609 = vpack.c.b16 %v483, %v474
    %v610 = vpack.c.b16 %v484, %v475
    %v611 = vpack.c.b16 %v485, %v476
    %v612 = vpack.c.b16 %v495, %v486
    %v613 = vpack.c.b16 %v496, %v487
    %v614 = vpack.c.b16 %v497, %v488
    %v615 = vpack.c.b16 %v498, %v489
    %v616 = vpack.c.b16 %v499, %v490
    %v617 = vpack.c.b16 %v500, %v491
    %v618 = vpack.c.b16 %v501, %v492
    %v619 = vpack.c.b16 %v502, %v493
    %v620 = vpack.c.b16 %v503, %v494
    %v621 = vpack.c.b16 %v513, %v504
    %v622 = vpack.c.b16 %v514, %v505
    %v623 = vpack.c.b16 %v515, %v506
    %v624 = vpack.c.b16 %v516, %v507
    %v625 = vpack.c.b16 %v517, %v508
    %v626 = vpack.c.b16 %v518, %v509
    %v627 = vpack.c.b16 %v519, %v510
    %v628 = vpack.c.b16 %v520, %v511
    %v629 = vpack.c.b16 %v521, %v512
    %v630 = vpack.c.b16 %v531, %v522
    %v631 = vpack.c.b16 %v532, %v523
    %v632 = vpack.c.b16 %v533, %v524
    %v633 = vpack.c.b16 %v534, %v525
    %v634 = vpack.c.b16 %v535, %v526
    %v635 = vpack.c.b16 %v536, %v527
    %v636 = vpack.c.b16 %v537, %v528
    %v637 = vpack.c.b16 %v538, %v529
    %v638 = vpack.c.b16 %v539, %v530
    %v639 = vpack.c.b16 %v549, %v540
    %v640 = vpack.c.b16 %v550, %v541
    %v641 = vpack.c.b16 %v551, %v542
    %v642 = vpack.c.b16 %v552, %v543
    %v643 = vpack.c.b16 %v553, %v544
    %v644 = vpack.c.b16 %v554, %v545
    %v645 = vpack.c.b16 %v555, %v546
    %v646 = vpack.c.b16 %v556, %v547
    %v647 = vpack.c.b16 %v557, %v548
    %v648 = vpack.c.b16 %v567, %v558
    %v649 = vpack.c.b16 %v568, %v559
    %v650 = vpack.c.b16 %v569, %v560
    %v651 = vpack.c.b16 %v570, %v561
    %v652 = vpack.c.b16 %v571, %v562
    %v653 = vpack.c.b16 %v572, %v563
    %v654 = vpack.c.b16 %v573, %v564
    %v655 = vpack.c.b16 %v574, %v565
    %v656 = vpack.c.b16 %v575, %v566
    %v657 = vpack.c.b16 %v585, %v576
    %v658 = vpack.c.b16 %v586, %v577
    %v659 = vpack.c.b16 %v587, %v578
    %v660 = vpack.c.b16 %v588, %v579
    %v661 = vpack.c.b16 %v589, %v580
    %v662 = vpack.c.b16 %v590, %v581
    %v663 = vpack.c.b16 %v591, %v582
    %v664 = vpack.c.b16 %v592, %v583
    %v665 = vpack.c.b16 %v593, %v584
    %738 = vmatprep.subr.bf16.mxu0 %v595
    %739 = vmatpush1.bf16.msra.mxu0 %v594
    %740 = vmatprep.subr.bf16.mxu0 %v604
    %741 = vmatpush1.bf16.msra.mxu0 %v603
    %742 = vmatprep.subr.bf16.mxu0 %v613
    %743 = vmatpush1.bf16.msra.mxu0 %v612
    %744 = vmatprep.subr.bf16.mxu0 %v622
    %745 = vmatpush1.bf16.msra.mxu0 %v621
    %746 = vmatprep.subr.bf16.mxu0 %v631
    %747 = vmatpush1.bf16.msra.mxu0 %v630
    %748 = vmatprep.subr.bf16.mxu0 %v640
    %749 = vmatpush1.bf16.msra.mxu0 %v639
    %750 = vmatprep.subr.bf16.mxu0 %v649
    %751 = vmatpush1.bf16.msra.mxu0 %v648
    %752 = vmatprep.subr.bf16.mxu0 %v658
    %753 = vmatpush1.bf16.msra.mxu0 %v657
    %754 = vmatprep.subr.bf16.mxu0 0
    %755 = vmatpush1.bf16.msra.mxu0 0
    %756 = vmatprep.subr.bf16.mxu0 0
    %757 = vmatpush1.bf16.msra.mxu0 0
    %758 = vmatprep.subr.bf16.mxu0 0
    %759 = vmatpush1.bf16.msra.mxu0 0
    %760 = vmatprep.subr.bf16.mxu0 0
    %761 = vmatpush1.bf16.msra.mxu0 0
    %762 = vmatprep.subr.bf16.mxu0 0
    %763 = vmatpush1.bf16.msra.mxu0 0
    %764 = vmatprep.subr.bf16.mxu0 0
    %765 = vmatpush1.bf16.msra.mxu0 0
    %766 = vmatprep.subr.bf16.mxu0 0
    %767 = vmatpush1.bf16.msra.mxu0 0
    %768 = vmatprep.subr.bf16.mxu0 0
    %769 = vmatpush1.bf16.msra.mxu0 0
    %770 = vmatprep.mubr.bf16.mxu0 0
    %771 = vmatmul.mubr.bf16.gmra.mrb[0].mxu0 %v286
    %v772 = vpop.f32.mrb[0].mxu0
    %v773 = vadd.f32 0.0, %v772
    %v774 = vpop.f32.mrb[0].mxu0
    %v775 = vadd.f32 0.0, %v774
    %v776 = vpop.f32.mrb[0].mxu0
    %v777 = vadd.f32 0.0, %v776
    %v778 = vpop.f32.mrb[0].mxu0
    %v779 = vadd.f32 0.0, %v778
    %780 = vmatprep.mubr.bf16.mxu0 0
    %781 = vmatmul.mubr.bf16.gmra.mrb[0].mxu0 %v287
    %v782 = vpop.f32.mrb[0].mxu0
    %v783 = vadd.f32 0.0, %v782
    %v784 = vpop.f32.mrb[0].mxu0
    %v785 = vadd.f32 0.0, %v784
    %v786 = vpop.f32.mrb[0].mxu0
    %v787 = vadd.f32 0.0, %v786
    %v788 = vpop.f32.mrb[0].mxu0
    %v789 = vadd.f32 0.0, %v788
    %790 = vmatprep.mubr.bf16.mxu0 0
    %791 = vmatmul.mubr.bf16.gmra.mrb[0].mxu0 %v288
    %v792 = vpop.f32.mrb[0].mxu0
    %v793 = vadd.f32 0.0, %v792
    %v794 = vpop.f32.mrb[0].mxu0
    %v795 = vadd.f32 0.0, %v794
    %v796 = vpop.f32.mrb[0].mxu0
    %v797 = vadd.f32 0.0, %v796
    %v798 = vpop.f32.mrb[0].mxu0
    %v799 = vadd.f32 0.0, %v798
    %800 = vmatprep.mubr.bf16.mxu0 0
    %801 = vmatmul.mubr.bf16.gmra.mrb[0].mxu0 %v289
    %v802 = vpop.f32.mrb[0].mxu0
    %v803 = vadd.f32 0.0, %v802
    %v804 = vpop.f32.mrb[0].mxu0
    %v805 = vadd.f32 0.0, %v804
    %v806 = vpop.f32.mrb[0].mxu0
    %v807 = vadd.f32 0.0, %v806
    %v808 = vpop.f32.mrb[0].mxu0
    %v809 = vadd.f32 0.0, %v808
    %810 = vdwg.mxu0
    %811 = vmatprep.subr.bf16.mxu0 %v597
    %812 = vmatpush1.bf16.msra.mxu0 %v596
    %813 = vmatprep.subr.bf16.mxu0 %v606
    %814 = vmatpush1.bf16.msra.mxu0 %v605
    %815 = vmatprep.subr.bf16.mxu0 %v615
    %816 = vmatpush1.bf16.msra.mxu0 %v614
    %817 = vmatprep.subr.bf16.mxu0 %v624
    %818 = vmatpush1.bf16.msra.mxu0 %v623
    %819 = vmatprep.subr.bf16.mxu0 %v633
    %820 = vmatpush1.bf16.msra.mxu0 %v632
    %821 = vmatprep.subr.bf16.mxu0 %v642
    %822 = vmatpush1.bf16.msra.mxu0 %v641
    %823 = vmatprep.subr.bf16.mxu0 %v651
    %824 = vmatpush1.bf16.msra.mxu0 %v650
    %825 = vmatprep.subr.bf16.mxu0 %v660
    %826 = vmatpush1.bf16.msra.mxu0 %v659
    %827 = vmatprep.subr.bf16.mxu0 0
    %828 = vmatpush1.bf16.msra.mxu0 0
    %829 = vmatprep.subr.bf16.mxu0 0
    %830 = vmatpush1.bf16.msra.mxu0 0
    %831 = vmatprep.subr.bf16.mxu0 0
    %832 = vmatpush1.bf16.msra.mxu0 0
    %833 = vmatprep.subr.bf16.mxu0 0
    %834 = vmatpush1.bf16.msra.mxu0 0
    %835 = vmatprep.subr.bf16.mxu0 0
    %836 = vmatpush1.bf16.msra.mxu0 0
    %837 = vmatprep.subr.bf16.mxu0 0
    %838 = vmatpush1.bf16.msra.mxu0 0
    %839 = vmatprep.subr.bf16.mxu0 0
    %840 = vmatpush1.bf16.msra.mxu0 0
    %841 = vmatprep.subr.bf16.mxu0 0
    %842 = vmatpush1.bf16.msra.mxu0 0
    %843 = vmatprep.mubr.bf16.mxu0 0
    %844 = vmatmul.mubr.bf16.gmra.mrb[0].mxu0 %v286
    %v845 = vpop.f32.mrb[0].mxu0
    %v846 = vadd.f32 0.0, %v845
    %v847 = vpop.f32.mrb[0].mxu0
    %v848 = vadd.f32 0.0, %v847
    %v849 = vpop.f32.mrb[0].mxu0
    %v850 = vadd.f32 0.0, %v849
    %v851 = vpop.f32.mrb[0].mxu0
    %v852 = vadd.f32 0.0, %v851
    %853 = vmatprep.mubr.bf16.mxu0 0
    %854 = vmatmul.mubr.bf16.gmra.mrb[0].mxu0 %v287
    %v855 = vpop.f32.mrb[0].mxu0
    %v856 = vadd.f32 0.0, %v855
    %v857 = vpop.f32.mrb[0].mxu0
    %v858 = vadd.f32 0.0, %v857
    %v859 = vpop.f32.mrb[0].mxu0
    %v860 = vadd.f32 0.0, %v859
    %v861 = vpop.f32.mrb[0].mxu0
    %v862 = vadd.f32 0.0, %v861
    %863 = vmatprep.mubr.bf16.mxu0 0
    %864 = vmatmul.mubr.bf16.gmra.mrb[0].mxu0 %v288
    %v865 = vpop.f32.mrb[0].mxu0
    %v866 = vadd.f32 0.0, %v865
    %v867 = vpop.f32.mrb[0].mxu0
    %v868 = vadd.f32 0.0, %v867
    %v869 = vpop.f32.mrb[0].mxu0
    %v870 = vadd.f32 0.0, %v869
    %v871 = vpop.f32.mrb[0].mxu0
    %v872 = vadd.f32 0.0, %v871
    %873 = vmatprep.mubr.bf16.mxu0 0
    %874 = vmatmul.mubr.bf16.gmra.mrb[0].mxu0 %v289
    %v875 = vpop.f32.mrb[0].mxu0
    %v876 = vadd.f32 0.0, %v875
    %v877 = vpop.f32.mrb[0].mxu0
    %v878 = vadd.f32 0.0, %v877
    %v879 = vpop.f32.mrb[0].mxu0
    %v880 = vadd.f32 0.0, %v879
    %v881 = vpop.f32.mrb[0].mxu0
    %v882 = vadd.f32 0.0, %v881
    %883 = vdwg.mxu0
    %884 = vmatprep.subr.bf16.mxu0 %v599
    %885 = vmatpush1.bf16.msra.mxu0 %v598
    %886 = vmatprep.subr.bf16.mxu0 %v608
    %887 = vmatpush1.bf16.msra.mxu0 %v607
    %888 = vmatprep.subr.bf16.mxu0 %v617
    %889 = vmatpush1.bf16.msra.mxu0 %v616
    %890 = vmatprep.subr.bf16.mxu0 %v626
    %891 = vmatpush1.bf16.msra.mxu0 %v625
    %892 = vmatprep.subr.bf16.mxu0 %v635
    %893 = vmatpush1.bf16.msra.mxu0 %v634
    %894 = vmatprep.subr.bf16.mxu0 %v644
    %895 = vmatpush1.bf16.msra.mxu0 %v643
    %896 = vmatprep.subr.bf16.mxu0 %v653
    %897 = vmatpush1.bf16.msra.mxu0 %v652
    %898 = vmatprep.subr.bf16.mxu0 %v662
    %899 = vmatpush1.bf16.msra.mxu0 %v661
    %900 = vmatprep.subr.bf16.mxu0 0
    %901 = vmatpush1.bf16.msra.mxu0 0
    %902 = vmatprep.subr.bf16.mxu0 0
    %903 = vmatpush1.bf16.msra.mxu0 0
    %904 = vmatprep.subr.bf16.mxu0 0
    %905 = vmatpush1.bf16.msra.mxu0 0
    %906 = vmatprep.subr.bf16.mxu0 0
    %907 = vmatpush1.bf16.msra.mxu0 0
    %908 = vmatprep.subr.bf16.mxu0 0
    %909 = vmatpush1.bf16.msra.mxu0 0
    %910 = vmatprep.subr.bf16.mxu0 0
    %911 = vmatpush1.bf16.msra.mxu0 0
    %912 = vmatprep.subr.bf16.mxu0 0
    %913 = vmatpush1.bf16.msra.mxu0 0
    %914 = vmatprep.subr.bf16.mxu0 0
    %915 = vmatpush1.bf16.msra.mxu0 0
    %916 = vmatprep.mubr.bf16.mxu0 0
    %917 = vmatmul.mubr.bf16.gmra.mrb[0].mxu0 %v286
    %v918 = vpop.f32.mrb[0].mxu0
    %v919 = vadd.f32 0.0, %v918
    %v920 = vpop.f32.mrb[0].mxu0
    %v921 = vadd.f32 0.0, %v920
    %v922 = vpop.f32.mrb[0].mxu0
    %v923 = vadd.f32 0.0, %v922
    %v924 = vpop.f32.mrb[0].mxu0
    %v925 = vadd.f32 0.0, %v924
    %926 = vmatprep.mubr.bf16.mxu0 0
    %927 = vmatmul.mubr.bf16.gmra.mrb[0].mxu0 %v287
    %v928 = vpop.f32.mrb[0].mxu0
    %v929 = vadd.f32 0.0, %v928
    %v930 = vpop.f32.mrb[0].mxu0
    %v931 = vadd.f32 0.0, %v930
    %v932 = vpop.f32.mrb[0].mxu0
    %v933 = vadd.f32 0.0, %v932
    %v934 = vpop.f32.mrb[0].mxu0
    %v935 = vadd.f32 0.0, %v934
    %936 = vmatprep.mubr.bf16.mxu0 0
    %937 = vmatmul.mubr.bf16.gmra.mrb[0].mxu0 %v288
    %v938 = vpop.f32.mrb[0].mxu0
    %v939 = vadd.f32 0.0, %v938
    %v940 = vpop.f32.mrb[0].mxu0
    %v941 = vadd.f32 0.0, %v940
    %v942 = vpop.f32.mrb[0].mxu0
    %v943 = vadd.f32 0.0, %v942
    %v944 = vpop.f32.mrb[0].mxu0
    %v945 = vadd.f32 0.0, %v944
    %946 = vmatprep.mubr.bf16.mxu0 0
    %947 = vmatmul.mubr.bf16.gmra.mrb[0].mxu0 %v289
    %v948 = vpop.f32.mrb[0].mxu0
    %v949 = vadd.f32 0.0, %v948
    %v950 = vpop.f32.mrb[0].mxu0
    %v951 = vadd.f32 0.0, %v950
    %v952 = vpop.f32.mrb[0].mxu0
    %v953 = vadd.f32 0.0, %v952
    %v954 = vpop.f32.mrb[0].mxu0
    %v955 = vadd.f32 0.0, %v954
    %956 = vdwg.mxu0
    %957 = vmatprep.subr.bf16.mxu0 %v601
    %958 = vmatpush1.bf16.msra.mxu0 %v600
    %959 = vmatprep.subr.bf16.mxu0 %v610
    %960 = vmatpush1.bf16.msra.mxu0 %v609
    %961 = vmatprep.subr.bf16.mxu0 %v619
    %962 = vmatpush1.bf16.msra.mxu0 %v618
    %963 = vmatprep.subr.bf16.mxu0 %v628
    %964 = vmatpush1.bf16.msra.mxu0 %v627
    %965 = vmatprep.subr.bf16.mxu0 %v637
    %966 = vmatpush1.bf16.msra.mxu0 %v636
    %967 = vmatprep.subr.bf16.mxu0 %v646
    %968 = vmatpush1.bf16.msra.mxu0 %v645
    %969 = vmatprep.subr.bf16.mxu0 %v655
    %970 = vmatpush1.bf16.msra.mxu0 %v654
    %971 = vmatprep.subr.bf16.mxu0 %v664
    %972 = vmatpush1.bf16.msra.mxu0 %v663
    %973 = vmatprep.subr.bf16.mxu0 0
    %974 = vmatpush1.bf16.msra.mxu0 0
    %975 = vmatprep.subr.bf16.mxu0 0
    %976 = vmatpush1.bf16.msra.mxu0 0
    %977 = vmatprep.subr.bf16.mxu0 0
    %978 = vmatpush1.bf16.msra.mxu0 0
    %979 = vmatprep.subr.bf16.mxu0 0
    %980 = vmatpush1.bf16.msra.mxu0 0
    %981 = vmatprep.subr.bf16.mxu0 0
    %982 = vmatpush1.bf16.msra.mxu0 0
    %983 = vmatprep.subr.bf16.mxu0 0
    %984 = vmatpush1.bf16.msra.mxu0 0
    %985 = vmatprep.subr.bf16.mxu0 0
    %986 = vmatpush1.bf16.msra.mxu0 0
    %987 = vmatprep.subr.bf16.mxu0 0
    %988 = vmatpush1.bf16.msra.mxu0 0
    %989 = vmatprep.mubr.bf16.mxu0 0
    %990 = vmatmul.mubr.bf16.gmra.mrb[0].mxu0 %v286
    %v991 = vpop.f32.mrb[0].mxu0
    %v992 = vadd.f32 0.0, %v991
    %v993 = vpop.f32.mrb[0].mxu0
    %v994 = vadd.f32 0.0, %v993
    %v995 = vpop.f32.mrb[0].mxu0
    %v996 = vadd.f32 0.0, %v995
    %v997 = vpop.f32.mrb[0].mxu0
    %v998 = vadd.f32 0.0, %v997
    %999 = vmatprep.mubr.bf16.mxu0 0
    %1000 = vmatmul.mubr.bf16.gmra.mrb[0].mxu0 %v287
    %v1001 = vpop.f32.mrb[0].mxu0
    %v1002 = vadd.f32 0.0, %v1001
    %v1003 = vpop.f32.mrb[0].mxu0
    %v1004 = vadd.f32 0.0, %v1003
    %v1005 = vpop.f32.mrb[0].mxu0
    %v1006 = vadd.f32 0.0, %v1005
    %v1007 = vpop.f32.mrb[0].mxu0
    %v1008 = vadd.f32 0.0, %v1007
    %1009 = vmatprep.mubr.bf16.mxu0 0
    %1010 = vmatmul.mubr.bf16.gmra.mrb[0].mxu0 %v288
    %v1011 = vpop.f32.mrb[0].mxu0
    %v1012 = vadd.f32 0.0, %v1011
    %v1013 = vpop.f32.mrb[0].mxu0
    %v1014 = vadd.f32 0.0, %v1013
    %v1015 = vpop.f32.mrb[0].mxu0
    %v1016 = vadd.f32 0.0, %v1015
    %v1017 = vpop.f32.mrb[0].mxu0
    %v1018 = vadd.f32 0.0, %v1017
    %1019 = vmatprep.mubr.bf16.mxu0 0
    %1020 = vmatmul.mubr.bf16.gmra.mrb[0].mxu0 %v289
    %v1021 = vpop.f32.mrb[0].mxu0
    %v1022 = vadd.f32 0.0, %v1021
    %v1023 = vpop.f32.mrb[0].mxu0
    %v1024 = vadd.f32 0.0, %v1023
    %v1025 = vpop.f32.mrb[0].mxu0
    %v1026 = vadd.f32 0.0, %v1025
    %v1027 = vpop.f32.mrb[0].mxu0
    %v1028 = vadd.f32 0.0, %v1027
    %1029 = vdwg.mxu0
    %1030 = vmatprep.subr.bf16.mxu0 0
    %1031 = vmatpush1.bf16.msra.mxu0 %v602
    %1032 = vmatprep.subr.bf16.mxu0 0
    %1033 = vmatpush1.bf16.msra.mxu0 %v611
    %1034 = vmatprep.subr.bf16.mxu0 0
    %1035 = vmatpush1.bf16.msra.mxu0 %v620
    %1036 = vmatprep.subr.bf16.mxu0 0
    %1037 = vmatpush1.bf16.msra.mxu0 %v629
    %1038 = vmatprep.subr.bf16.mxu0 0
    %1039 = vmatpush1.bf16.msra.mxu0 %v638
    %1040 = vmatprep.subr.bf16.mxu0 0
    %1041 = vmatpush1.bf16.msra.mxu0 %v647
    %1042 = vmatprep.subr.bf16.mxu0 0
    %1043 = vmatpush1.bf16.msra.mxu0 %v656
    %1044 = vmatprep.subr.bf16.mxu0 0
    %1045 = vmatpush1.bf16.msra.mxu0 %v665
    %1046 = vmatprep.subr.bf16.mxu0 0
    %1047 = vmatpush1.bf16.msra.mxu0 0
    %1048 = vmatprep.subr.bf16.mxu0 0
    %1049 = vmatpush1.bf16.msra.mxu0 0
    %1050 = vmatprep.subr.bf16.mxu0 0
    %1051 = vmatpush1.bf16.msra.mxu0 0
    %1052 = vmatprep.subr.bf16.mxu0 0
    %1053 = vmatpush1.bf16.msra.mxu0 0
    %1054 = vmatprep.subr.bf16.mxu0 0
    %1055 = vmatpush1.bf16.msra.mxu0 0
    %1056 = vmatprep.subr.bf16.mxu0 0
    %1057 = vmatpush1.bf16.msra.mxu0 0
    %1058 = vmatprep.subr.bf16.mxu0 0
    %1059 = vmatpush1.bf16.msra.mxu0 0
    %1060 = vmatprep.subr.bf16.mxu0 0
    %1061 = vmatpush1.bf16.msra.mxu0 0
    %1062 = vmatprep.mubr.bf16.mxu0 0
    %1063 = vmatmul.mubr.bf16.gmra.mrb[0].mxu0 %v286
    %v1064 = vpop.f32.mrb[0].mxu0
    %v1065 = vadd.f32 0.0, %v1064
    %v1066 = vpop.f32.mrb[0].mxu0
    %v1067 = vpop.f32.mrb[0].mxu0
    %v1068 = vadd.f32 0.0, %v1067
    %v1069 = vpop.f32.mrb[0].mxu0
    %1070 = vmatprep.mubr.bf16.mxu0 0
    %1071 = vmatmul.mubr.bf16.gmra.mrb[0].mxu0 %v287
    %v1072 = vpop.f32.mrb[0].mxu0
    %v1073 = vadd.f32 0.0, %v1072
    %v1074 = vpop.f32.mrb[0].mxu0
    %v1075 = vpop.f32.mrb[0].mxu0
    %v1076 = vadd.f32 0.0, %v1075
    %v1077 = vpop.f32.mrb[0].mxu0
    %1078 = vmatprep.mubr.bf16.mxu0 0
    %1079 = vmatmul.mubr.bf16.gmra.mrb[0].mxu0 %v288
    %v1080 = vpop.f32.mrb[0].mxu0
    %v1081 = vadd.f32 0.0, %v1080
    %v1082 = vpop.f32.mrb[0].mxu0
    %v1083 = vpop.f32.mrb[0].mxu0
    %v1084 = vadd.f32 0.0, %v1083
    %v1085 = vpop.f32.mrb[0].mxu0
    %1086 = vmatprep.mubr.bf16.mxu0 0
    %1087 = vmatmul.mubr.bf16.gmra.mrb[0].mxu0 %v289
    %v1088 = vpop.f32.mrb[0].mxu0
    %v1089 = vadd.f32 0.0, %v1088
    %v1090 = vpop.f32.mrb[0].mxu0
    %v1091 = vpop.f32.mrb[0].mxu0
    %v1092 = vadd.f32 0.0, %v1091
    %v1093 = vpop.f32.mrb[0].mxu0
    %1094 = vdwg.mxu0
    %v1095 = vld [vmem:[#allocation8] sm:$0x7]
    %v1104 = vrot.slane %v775, 1
    %v1105 = vrot.slane %v779, 1
    %v1106 = vrot.slane %v785, 1
    %v1107 = vrot.slane %v789, 1
    %v1108 = vrot.slane %v795, 1
    %v1109 = vrot.slane %v799, 1
    %v1110 = vrot.slane %v805, 1
    %v1111 = vrot.slane %v809, 1
    %v1120 = vadd.f32 %v773, %v1104
    %v1121 = vadd.f32 %v777, %v1105
    %v1122 = vadd.f32 %v783, %v1106
    %v1123 = vadd.f32 %v787, %v1107
    %v1124 = vadd.f32 %v793, %v1108
    %v1125 = vadd.f32 %v797, %v1109
    %v1126 = vadd.f32 %v803, %v1110
    %v1127 = vadd.f32 %v807, %v1111
    %v1129 = vlaneseq
    %v1130 = vshrl.u32 %v1129, 7
    %v1131 = vsub.s32 0, %v1130
    %v1132 = vrot.slane %v1095, %v1131
    %v1134 = vadd.f32 %v1120, %v1132
    %v1135 = vadd.f32 %v1121, %v1132
    %v1136 = vadd.f32 %v1122, %v1132
    %v1137 = vadd.f32 %v1123, %v1132
    %v1138 = vadd.f32 %v1124, %v1132
    %v1139 = vadd.f32 %v1125, %v1132
    %v1140 = vadd.f32 %v1126, %v1132
    %v1141 = vadd.f32 %v1127, %v1132
    %v1142 = vmax.f32 %v1134, 0.0
    %v1143 = vmax.f32 %v1135, 0.0
    %v1144 = vmax.f32 %v1136, 0.0
    %v1145 = vmax.f32 %v1137, 0.0
    %v1146 = vmax.f32 %v1138, 0.0
    %v1147 = vmax.f32 %v1139, 0.0
    %v1148 = vmax.f32 %v1140, 0.0
    %v1149 = vmax.f32 %v1141, 0.0
    %vm1150 = vcmask 1046528
    %v1151 = vsel %vm1150, %v1142, -inf
    %v1152 = vrot.slane %v1151, 4
    %v1153 = vmax.f32 %v1151, %v1152
    %v1154 = vrot.slane %v1153, 2
    %v1155 = vmax.f32 %v1153, %v1154
    %v1156 = vrot.slane %v1155, 1
    %v1157 = vmax.f32 %v1155, %v1156
    %v1158 = vsel %vm1150, %v1143, -inf
    %v1159 = vrot.slane %v1158, 4
    %v1160 = vmax.f32 %v1158, %v1159
    %v1161 = vrot.slane %v1160, 2
    %v1162 = vmax.f32 %v1160, %v1161
    %v1163 = vrot.slane %v1162, 1
    %v1164 = vmax.f32 %v1162, %v1163
    %v1165 = vsel %vm1150, %v1144, -inf
    %v1166 = vrot.slane %v1165, 4
    %v1167 = vmax.f32 %v1165, %v1166
    %v1168 = vrot.slane %v1167, 2
    %v1169 = vmax.f32 %v1167, %v1168
    %v1170 = vrot.slane %v1169, 1
    %v1171 = vmax.f32 %v1169, %v1170
    %v1172 = vsel %vm1150, %v1145, -inf
    %v1173 = vrot.slane %v1172, 4
    %v1174 = vmax.f32 %v1172, %v1173
    %v1175 = vrot.slane %v1174, 2
    %v1176 = vmax.f32 %v1174, %v1175
    %v1177 = vrot.slane %v1176, 1
    %v1178 = vmax.f32 %v1176, %v1177
    %v1179 = vsel %vm1150, %v1146, -inf
    %v1180 = vrot.slane %v1179, 4
    %v1181 = vmax.f32 %v1179, %v1180
    %v1182 = vrot.slane %v1181, 2
    %v1183 = vmax.f32 %v1181, %v1182
    %v1184 = vrot.slane %v1183, 1
    %v1185 = vmax.f32 %v1183, %v1184
    %v1186 = vsel %vm1150, %v1147, -inf
    %v1187 = vrot.slane %v1186, 4
    %v1188 = vmax.f32 %v1186, %v1187
    %v1189 = vrot.slane %v1188, 2
    %v1190 = vmax.f32 %v1188, %v1189
    %v1191 = vrot.slane %v1190, 1
    %v1192 = vmax.f32 %v1190, %v1191
    %v1193 = vsel %vm1150, %v1148, -inf
    %v1194 = vrot.slane %v1193, 4
    %v1195 = vmax.f32 %v1193, %v1194
    %v1196 = vrot.slane %v1195, 2
    %v1197 = vmax.f32 %v1195, %v1196
    %v1198 = vrot.slane %v1197, 1
    %v1199 = vmax.f32 %v1197, %v1198
    %v1200 = vsel %vm1150, %v1149, -inf
    %v1201 = vrot.slane %v1200, 4
    %v1202 = vmax.f32 %v1200, %v1201
    %v1203 = vrot.slane %v1202, 2
    %v1204 = vmax.f32 %v1202, %v1203
    %v1205 = vrot.slane %v1204, 1
    %v1206 = vmax.f32 %v1204, %v1205
    %v1207 = vpack.c.bf16 %v1157, %v1157
    %v1208 = vpack.c.bf16 %v1164, %v1164
    %v1209 = vpack.c.bf16 %v1171, %v1171
    %v1210 = vpack.c.bf16 %v1178, %v1178
    %v1211 = vpack.c.bf16 %v1185, %v1185
    %v1212 = vpack.c.bf16 %v1192, %v1192
    %v1213 = vpack.c.bf16 %v1199, %v1199
    %v1214 = vpack.c.bf16 %v1206, %v1206
    %v1215 = vld [vmem:[#allocation10] sm:$0xf]
    %v1216 = vld [vmem:[#allocation10 + $0x4] sm:$0xf]
    %v1217 = vld [vmem:[#allocation10 + $0x8] sm:$0xf]
    %v1218 = vld [vmem:[#allocation10 + $0xc] sm:$0xf]
    %v1219 = vld [vmem:[#allocation10 + $0x10] sm:$0xf]
    %v1220 = vld [vmem:[#allocation10 + $0x14] sm:$0xf]
    %v1221 = vld [vmem:[#allocation10 + $0x18] sm:$0xf]
    %v1222 = vld [vmem:[#allocation10 + $0x1c] sm:$0xf]
    %v1223 = vld [vmem:[#allocation10 + $0x20] sm:$0xf]
    %v1224 = vld [vmem:[#allocation10 + $0x24] sm:$0xf]
    %v1225 = vld [vmem:[#allocation10 + $0x28] sm:$0xf]
    %v1226 = vld [vmem:[#allocation10 + $0x2c] sm:$0xf]
    %v1227 = vld [vmem:[#allocation10 + $0x30] sm:$0xf]
    %v1228 = vld [vmem:[#allocation10 + $0x34] sm:$0xf]
    %v1229 = vld [vmem:[#allocation10 + $0x38] sm:$0xf]
    %v1230 = vld [vmem:[#allocation10 + $0x3c] sm:$0xf]
    %v1239 = vrot.slane %v848, 1
    %v1240 = vrot.slane %v852, 1
    %v1241 = vrot.slane %v858, 1
    %v1242 = vrot.slane %v862, 1
    %v1243 = vrot.slane %v868, 1
    %v1244 = vrot.slane %v872, 1
    %v1245 = vrot.slane %v878, 1
    %v1246 = vrot.slane %v882, 1
    %v1255 = vadd.f32 %v846, %v1239
    %v1256 = vadd.f32 %v850, %v1240
    %v1257 = vadd.f32 %v856, %v1241
    %v1258 = vadd.f32 %v860, %v1242
    %v1259 = vadd.f32 %v866, %v1243
    %v1260 = vadd.f32 %v870, %v1244
    %v1261 = vadd.f32 %v876, %v1245
    %v1262 = vadd.f32 %v880, %v1246
    %v1271 = vrot.slane %v919, 2
    %v1272 = vrot.slane %v923, 2
    %v1273 = vrot.slane %v929, 2
    %v1274 = vrot.slane %v933, 2
    %v1275 = vrot.slane %v939, 2
    %v1276 = vrot.slane %v943, 2
    %v1277 = vrot.slane %v949, 2
    %v1278 = vrot.slane %v953, 2
    %v1287 = vadd.f32 %v1255, %v1271
    %v1288 = vadd.f32 %v1256, %v1272
    %v1289 = vadd.f32 %v1257, %v1273
    %v1290 = vadd.f32 %v1258, %v1274
    %v1291 = vadd.f32 %v1259, %v1275
    %v1292 = vadd.f32 %v1260, %v1276
    %v1293 = vadd.f32 %v1261, %v1277
    %v1294 = vadd.f32 %v1262, %v1278
    %v1295 = vrot.slane %v1095, 1
    %v1296 = vlaneseq
    %v1297 = vshrl.u32 %v1296, 7
    %v1298 = vsub.s32 0, %v1297
    %v1299 = vrot.slane %v1295, %v1298
    %v1301 = vadd.f32 %v1287, %v1299
    %v1302 = vadd.f32 %v1288, %v1299
    %v1303 = vadd.f32 %v1289, %v1299
    %v1304 = vadd.f32 %v1290, %v1299
    %v1305 = vadd.f32 %v1291, %v1299
    %v1306 = vadd.f32 %v1292, %v1299
    %v1307 = vadd.f32 %v1293, %v1299
    %v1308 = vadd.f32 %v1294, %v1299
    %v1309 = vmax.f32 %v1301, 0.0
    %v1310 = vmax.f32 %v1302, 0.0
    %v1311 = vmax.f32 %v1303, 0.0
    %v1312 = vmax.f32 %v1304, 0.0
    %v1313 = vmax.f32 %v1305, 0.0
    %v1314 = vmax.f32 %v1306, 0.0
    %v1315 = vmax.f32 %v1307, 0.0
    %v1316 = vmax.f32 %v1308, 0.0
    %vm1317 = vcmask 1045504
    %v1318 = vsel %vm1317, %v1309, -inf
    %v1319 = vrot.slane %v1318, 4
    %v1320 = vmax.f32 %v1318, %v1319
    %v1321 = vrot.slane %v1320, 2
    %v1322 = vmax.f32 %v1320, %v1321
    %v1323 = vrot.slane %v1322, 1
    %v1324 = vmax.f32 %v1322, %v1323
    %v1325 = vsel %vm1317, %v1310, -inf
    %v1326 = vrot.slane %v1325, 4
    %v1327 = vmax.f32 %v1325, %v1326
    %v1328 = vrot.slane %v1327, 2
    %v1329 = vmax.f32 %v1327, %v1328
    %v1330 = vrot.slane %v1329, 1
    %v1331 = vmax.f32 %v1329, %v1330
    %v1332 = vsel %vm1317, %v1311, -inf
    %v1333 = vrot.slane %v1332, 4
    %v1334 = vmax.f32 %v1332, %v1333
    %v1335 = vrot.slane %v1334, 2
    %v1336 = vmax.f32 %v1334, %v1335
    %v1337 = vrot.slane %v1336, 1
    %v1338 = vmax.f32 %v1336, %v1337
    %v1339 = vsel %vm1317, %v1312, -inf
    %v1340 = vrot.slane %v1339, 4
    %v1341 = vmax.f32 %v1339, %v1340
    %v1342 = vrot.slane %v1341, 2
    %v1343 = vmax.f32 %v1341, %v1342
    %v1344 = vrot.slane %v1343, 1
    %v1345 = vmax.f32 %v1343, %v1344
    %v1346 = vsel %vm1317, %v1313, -inf
    %v1347 = vrot.slane %v1346, 4
    %v1348 = vmax.f32 %v1346, %v1347
    %v1349 = vrot.slane %v1348, 2
    %v1350 = vmax.f32 %v1348, %v1349
    %v1351 = vrot.slane %v1350, 1
    %v1352 = vmax.f32 %v1350, %v1351
    %v1353 = vsel %vm1317, %v1314, -inf
    %v1354 = vrot.slane %v1353, 4
    %v1355 = vmax.f32 %v1353, %v1354
    %v1356 = vrot.slane %v1355, 2
    %v1357 = vmax.f32 %v1355, %v1356
    %v1358 = vrot.slane %v1357, 1
    %v1359 = vmax.f32 %v1357, %v1358
    %v1360 = vsel %vm1317, %v1315, -inf
    %v1361 = vrot.slane %v1360, 4
    %v1362 = vmax.f32 %v1360, %v1361
    %v1363 = vrot.slane %v1362, 2
    %v1364 = vmax.f32 %v1362, %v1363
    %v1365 = vrot.slane %v1364, 1
    %v1366 = vmax.f32 %v1364, %v1365
    %v1367 = vsel %vm1317, %v1316, -inf
    %v1368 = vrot.slane %v1367, 4
    %v1369 = vmax.f32 %v1367, %v1368
    %v1370 = vrot.slane %v1369, 2
    %v1371 = vmax.f32 %v1369, %v1370
    %v1372 = vrot.slane %v1371, 1
    %v1373 = vmax.f32 %v1371, %v1372
    %v1374 = vpack.c.bf16 %v1324, %v1324
    %v1375 = vpack.c.bf16 %v1331, %v1331
    %v1376 = vpack.c.bf16 %v1338, %v1338
    %v1377 = vpack.c.bf16 %v1345, %v1345
    %v1378 = vpack.c.bf16 %v1352, %v1352
    %v1379 = vpack.c.bf16 %v1359, %v1359
    %v1380 = vpack.c.bf16 %v1366, %v1366
    %v1381 = vpack.c.bf16 %v1373, %v1373
    %s1382 = scalar_lea.vmem [#allocation10], 64
    %v1383 = vld [vmem:[%s1382] sm:$0xf]
    %v1384 = vld [vmem:[%s1382 + $0x4] sm:$0xf]
    %v1385 = vld [vmem:[%s1382 + $0x8] sm:$0xf]
    %v1386 = vld [vmem:[%s1382 + $0xc] sm:$0xf]
    %v1387 = vld [vmem:[%s1382 + $0x10] sm:$0xf]
    %v1388 = vld [vmem:[%s1382 + $0x14] sm:$0xf]
    %v1389 = vld [vmem:[%s1382 + $0x18] sm:$0xf]
    %v1390 = vld [vmem:[%s1382 + $0x1c] sm:$0xf]
    %v1391 = vld [vmem:[%s1382 + $0x20] sm:$0xf]
    %v1392 = vld [vmem:[%s1382 + $0x24] sm:$0xf]
    %v1393 = vld [vmem:[%s1382 + $0x28] sm:$0xf]
    %v1394 = vld [vmem:[%s1382 + $0x2c] sm:$0xf]
    %v1395 = vld [vmem:[%s1382 + $0x30] sm:$0xf]
    %v1396 = vld [vmem:[%s1382 + $0x34] sm:$0xf]
    %v1397 = vld [vmem:[%s1382 + $0x38] sm:$0xf]
    %v1398 = vld [vmem:[%s1382 + $0x3c] sm:$0xf]
    %v1407 = vunpack.c.l.b16 %v1374
    %v1408 = vunpack.c.l.b16 %v1375
    %v1409 = vunpack.c.l.b16 %v1376
    %v1410 = vunpack.c.l.b16 %v1377
    %v1411 = vunpack.c.l.b16 %v1378
    %v1412 = vunpack.c.l.b16 %v1379
    %v1413 = vunpack.c.l.b16 %v1380
    %v1414 = vunpack.c.l.b16 %v1381
    %vm1415 = vcmask 1041409
    %v1416 = vsel %vm1415, %v1408, %v1407
    %vm1417 = vcmask 1042434
    %v1418 = vsel %vm1417, %v1409, %v1416
    %vm1419 = vcmask 1043459
    %v1420 = vsel %vm1419, %v1410, %v1418
    %vm1421 = vcmask 1044484
    %v1422 = vsel %vm1421, %v1411, %v1420
    %vm1423 = vcmask 1045509
    %v1424 = vsel %vm1423, %v1412, %v1422
    %vm1425 = vcmask 1046534
    %v1426 = vsel %vm1425, %v1413, %v1424
    %vm1427 = vcmask 1047559
    %v1428 = vsel %vm1427, %v1414, %v1426
    %v1429 = vpack.c.b16 %v1428, %v1428
    %v1447 = vunpack.c.l.b16 %v1383
    %v1448 = vunpack.c.l.b16 %v1384
    %v1449 = vunpack.c.l.b16 %v1385
    %v1450 = vunpack.c.l.b16 %v1386
    %v1451 = vunpack.c.l.b16 %v1387
    %v1452 = vunpack.c.l.b16 %v1388
    %v1453 = vunpack.c.l.b16 %v1389
    %v1454 = vunpack.c.l.b16 %v1390
    %v1455 = vunpack.c.l.b16 %v1391
    %v1456 = vunpack.c.l.b16 %v1392
    %v1457 = vunpack.c.l.b16 %v1393
    %v1458 = vunpack.c.l.b16 %v1394
    %v1459 = vunpack.c.l.b16 %v1395
    %v1460 = vunpack.c.l.b16 %v1396
    %v1461 = vunpack.c.l.b16 %v1397
    %v1462 = vunpack.c.l.b16 %v1398
    %v1463 = vpack.c.b16 %v1448, %v1447
    %v1464 = vpack.c.b16 %v1450, %v1449
    %v1465 = vpack.c.b16 %v1452, %v1451
    %v1466 = vpack.c.b16 %v1454, %v1453
    %v1467 = vpack.c.b16 %v1456, %v1455
    %v1468 = vpack.c.b16 %v1458, %v1457
    %v1469 = vpack.c.b16 %v1460, %v1459
    %v1470 = vpack.c.b16 %v1462, %v1461
    %1479 = vmatprep.subr.bf16.mxu0 0
    %1480 = vmatpush1.bf16.msra.mxu0 %v1463
    %1481 = vmatprep.subr.bf16.mxu0 0
    %1482 = vmatpush1.bf16.msra.mxu0 %v1464
    %1483 = vmatprep.subr.bf16.mxu0 0
    %1484 = vmatpush1.bf16.msra.mxu0 %v1465
    %1485 = vmatprep.subr.bf16.mxu0 0
    %1486 = vmatpush1.bf16.msra.mxu0 %v1466
    %1487 = vmatprep.subr.bf16.mxu0 0
    %1488 = vmatpush1.bf16.msra.mxu0 %v1467
    %1489 = vmatprep.subr.bf16.mxu0 0
    %1490 = vmatpush1.bf16.msra.mxu0 %v1468
    %1491 = vmatprep.subr.bf16.mxu0 0
    %1492 = vmatpush1.bf16.msra.mxu0 %v1469
    %1493 = vmatprep.subr.bf16.mxu0 0
    %1494 = vmatpush1.bf16.msra.mxu0 %v1470
    %1495 = vmatprep.subr.bf16.mxu0 0
    %1496 = vmatpush1.bf16.msra.mxu0 0
    %1497 = vmatprep.subr.bf16.mxu0 0
    %1498 = vmatpush1.bf16.msra.mxu0 0
    %1499 = vmatprep.subr.bf16.mxu0 0
    %1500 = vmatpush1.bf16.msra.mxu0 0
    %1501 = vmatprep.subr.bf16.mxu0 0
    %1502 = vmatpush1.bf16.msra.mxu0 0
    %1503 = vmatprep.subr.bf16.mxu0 0
    %1504 = vmatpush1.bf16.msra.mxu0 0
    %1505 = vmatprep.subr.bf16.mxu0 0
    %1506 = vmatpush1.bf16.msra.mxu0 0
    %1507 = vmatprep.subr.bf16.mxu0 0
    %1508 = vmatpush1.bf16.msra.mxu0 0
    %1509 = vmatprep.subr.bf16.mxu0 0
    %1510 = vmatpush1.bf16.msra.mxu0 0
    %1511 = vmatprep.mubr.bf16.mxu0 0
    %1512 = vmatmul.mubr.bf16.gmra.mrb[0].mxu0 %v1429
    %v1513 = vpop.f32.mrb[0].mxu0
    %v1514 = vadd.f32 0.0, %v1513
    %v1515 = vpop.f32.mrb[0].mxu0
    %v1516 = vpop.f32.mrb[0].mxu0
    %v1517 = vpop.f32.mrb[0].mxu0
    %1518 = vdwg.mxu0
    %v1527 = vunpack.c.l.b16 %v1207
    %v1528 = vunpack.c.l.b16 %v1208
    %v1529 = vunpack.c.l.b16 %v1209
    %v1530 = vunpack.c.l.b16 %v1210
    %v1531 = vunpack.c.l.b16 %v1211
    %v1532 = vunpack.c.l.b16 %v1212
    %v1533 = vunpack.c.l.b16 %v1213
    %v1534 = vunpack.c.l.b16 %v1214
    %v1535 = vsel %vm1415, %v1528, %v1527
    %v1536 = vsel %vm1417, %v1529, %v1535
    %v1537 = vsel %vm1419, %v1530, %v1536
    %v1538 = vsel %vm1421, %v1531, %v1537
    %v1539 = vsel %vm1423, %v1532, %v1538
    %v1540 = vsel %vm1425, %v1533, %v1539
    %v1541 = vsel %vm1427, %v1534, %v1540
    %v1542 = vpack.c.b16 %v1541, %v1541
    %v1560 = vunpack.c.l.b16 %v1215
    %v1561 = vunpack.c.l.b16 %v1216
    %v1562 = vunpack.c.l.b16 %v1217
    %v1563 = vunpack.c.l.b16 %v1218
    %v1564 = vunpack.c.l.b16 %v1219
    %v1565 = vunpack.c.l.b16 %v1220
    %v1566 = vunpack.c.l.b16 %v1221
    %v1567 = vunpack.c.l.b16 %v1222
    %v1568 = vunpack.c.l.b16 %v1223
    %v1569 = vunpack.c.l.b16 %v1224
    %v1570 = vunpack.c.l.b16 %v1225
    %v1571 = vunpack.c.l.b16 %v1226
    %v1572 = vunpack.c.l.b16 %v1227
    %v1573 = vunpack.c.l.b16 %v1228
    %v1574 = vunpack.c.l.b16 %v1229
    %v1575 = vunpack.c.l.b16 %v1230
    %v1576 = vpack.c.b16 %v1561, %v1560
    %v1577 = vpack.c.b16 %v1563, %v1562
    %v1578 = vpack.c.b16 %v1565, %v1564
    %v1579 = vpack.c.b16 %v1567, %v1566
    %v1580 = vpack.c.b16 %v1569, %v1568
    %v1581 = vpack.c.b16 %v1571, %v1570
    %v1582 = vpack.c.b16 %v1573, %v1572
    %v1583 = vpack.c.b16 %v1575, %v1574
    %1592 = vmatprep.subr.bf16.mxu0 0
    %1593 = vmatpush1.bf16.msra.mxu0 %v1576
    %1594 = vmatprep.subr.bf16.mxu0 0
    %1595 = vmatpush1.bf16.msra.mxu0 %v1577
    %1596 = vmatprep.subr.bf16.mxu0 0
    %1597 = vmatpush1.bf16.msra.mxu0 %v1578
    %1598 = vmatprep.subr.bf16.mxu0 0
    %1599 = vmatpush1.bf16.msra.mxu0 %v1579
    %1600 = vmatprep.subr.bf16.mxu0 0
    %1601 = vmatpush1.bf16.msra.mxu0 %v1580
    %1602 = vmatprep.subr.bf16.mxu0 0
    %1603 = vmatpush1.bf16.msra.mxu0 %v1581
    %1604 = vmatprep.subr.bf16.mxu0 0
    %1605 = vmatpush1.bf16.msra.mxu0 %v1582
    %1606 = vmatprep.subr.bf16.mxu0 0
    %1607 = vmatpush1.bf16.msra.mxu0 %v1583
    %1608 = vmatprep.subr.bf16.mxu0 0
    %1609 = vmatpush1.bf16.msra.mxu0 0
    %1610 = vmatprep.subr.bf16.mxu0 0
    %1611 = vmatpush1.bf16.msra.mxu0 0
    %1612 = vmatprep.subr.bf16.mxu0 0
    %1613 = vmatpush1.bf16.msra.mxu0 0
    %1614 = vmatprep.subr.bf16.mxu0 0
    %1615 = vmatpush1.bf16.msra.mxu0 0
    %1616 = vmatprep.subr.bf16.mxu0 0
    %1617 = vmatpush1.bf16.msra.mxu0 0
    %1618 = vmatprep.subr.bf16.mxu0 0
    %1619 = vmatpush1.bf16.msra.mxu0 0
    %1620 = vmatprep.subr.bf16.mxu0 0
    %1621 = vmatpush1.bf16.msra.mxu0 0
    %1622 = vmatprep.subr.bf16.mxu0 0
    %1623 = vmatpush1.bf16.msra.mxu0 0
    %1624 = vmatprep.mubr.bf16.mxu0 0
    %1625 = vmatmul.mubr.bf16.gmra.mrb[0].mxu0 %v1542
    %v1626 = vpop.f32.mrb[0].mxu0
    %v1627 = vadd.f32 %v1514, %v1626
    %v1628 = vpop.f32.mrb[0].mxu0
    %v1629 = vpop.f32.mrb[0].mxu0
    %v1630 = vpop.f32.mrb[0].mxu0
    %1631 = vdwg.mxu0
    %v1640 = vrot.slane %v992, 1
    %v1641 = vrot.slane %v996, 1
    %v1642 = vrot.slane %v1002, 1
    %v1643 = vrot.slane %v1006, 1
    %v1644 = vrot.slane %v1012, 1
    %v1645 = vrot.slane %v1016, 1
    %v1646 = vrot.slane %v1022, 1
    %v1647 = vrot.slane %v1026, 1
    %v1656 = vadd.f32 %v921, %v1640
    %v1657 = vadd.f32 %v925, %v1641
    %v1658 = vadd.f32 %v931, %v1642
    %v1659 = vadd.f32 %v935, %v1643
    %v1660 = vadd.f32 %v941, %v1644
    %v1661 = vadd.f32 %v945, %v1645
    %v1662 = vadd.f32 %v951, %v1646
    %v1663 = vadd.f32 %v955, %v1647
    %v1672 = vrot.slane %v994, 2
    %v1673 = vrot.slane %v998, 2
    %v1674 = vrot.slane %v1004, 2
    %v1675 = vrot.slane %v1008, 2
    %v1676 = vrot.slane %v1014, 2
    %v1677 = vrot.slane %v1018, 2
    %v1678 = vrot.slane %v1024, 2
    %v1679 = vrot.slane %v1028, 2
    %v1688 = vadd.f32 %v1656, %v1672
    %v1689 = vadd.f32 %v1657, %v1673
    %v1690 = vadd.f32 %v1658, %v1674
    %v1691 = vadd.f32 %v1659, %v1675
    %v1692 = vadd.f32 %v1660, %v1676
    %v1693 = vadd.f32 %v1661, %v1677
    %v1694 = vadd.f32 %v1662, %v1678
    %v1695 = vadd.f32 %v1663, %v1679
    %v1704 = vrot.slane %v1065, 3
    %v1705 = vrot.slane %v1068, 3
    %v1706 = vrot.slane %v1073, 3
    %v1707 = vrot.slane %v1076, 3
    %v1708 = vrot.slane %v1081, 3
    %v1709 = vrot.slane %v1084, 3
    %v1710 = vrot.slane %v1089, 3
    %v1711 = vrot.slane %v1092, 3
    %v1720 = vadd.f32 %v1688, %v1704
    %v1721 = vadd.f32 %v1689, %v1705
    %v1722 = vadd.f32 %v1690, %v1706
    %v1723 = vadd.f32 %v1691, %v1707
    %v1724 = vadd.f32 %v1692, %v1708
    %v1725 = vadd.f32 %v1693, %v1709
    %v1726 = vadd.f32 %v1694, %v1710
    %v1727 = vadd.f32 %v1695, %v1711
    %v1728 = vrot.slane %v1095, 2
    %v1729 = vlaneseq
    %v1730 = vshrl.u32 %v1729, 7
    %v1731 = vsub.s32 0, %v1730
    %v1732 = vrot.slane %v1728, %v1731
    %v1734 = vadd.f32 %v1720, %v1732
    %v1735 = vadd.f32 %v1721, %v1732
    %v1736 = vadd.f32 %v1722, %v1732
    %v1737 = vadd.f32 %v1723, %v1732
    %v1738 = vadd.f32 %v1724, %v1732
    %v1739 = vadd.f32 %v1725, %v1732
    %v1740 = vadd.f32 %v1726, %v1732
    %v1741 = vadd.f32 %v1727, %v1732
    %v1742 = vmax.f32 %v1734, 0.0
    %v1743 = vmax.f32 %v1735, 0.0
    %v1744 = vmax.f32 %v1736, 0.0
    %v1745 = vmax.f32 %v1737, 0.0
    %v1746 = vmax.f32 %v1738, 0.0
    %v1747 = vmax.f32 %v1739, 0.0
    %v1748 = vmax.f32 %v1740, 0.0
    %v1749 = vmax.f32 %v1741, 0.0
    %vm1750 = vcmask 1044480
    %v1751 = vsel %vm1750, %v1742, -inf
    %v1752 = vrot.slane %v1751, 4
    %v1753 = vmax.f32 %v1751, %v1752
    %v1754 = vrot.slane %v1753, 2
    %v1755 = vmax.f32 %v1753, %v1754
    %v1756 = vrot.slane %v1755, 1
    %v1757 = vmax.f32 %v1755, %v1756
    %v1758 = vsel %vm1750, %v1743, -inf
    %v1759 = vrot.slane %v1758, 4
    %v1760 = vmax.f32 %v1758, %v1759
    %v1761 = vrot.slane %v1760, 2
    %v1762 = vmax.f32 %v1760, %v1761
    %v1763 = vrot.slane %v1762, 1
    %v1764 = vmax.f32 %v1762, %v1763
    %v1765 = vsel %vm1750, %v1744, -inf
    %v1766 = vrot.slane %v1765, 4
    %v1767 = vmax.f32 %v1765, %v1766
    %v1768 = vrot.slane %v1767, 2
    %v1769 = vmax.f32 %v1767, %v1768
    %v1770 = vrot.slane %v1769, 1
    %v1771 = vmax.f32 %v1769, %v1770
    %v1772 = vsel %vm1750, %v1745, -inf
    %v1773 = vrot.slane %v1772, 4
    %v1774 = vmax.f32 %v1772, %v1773
    %v1775 = vrot.slane %v1774, 2
    %v1776 = vmax.f32 %v1774, %v1775
    %v1777 = vrot.slane %v1776, 1
    %v1778 = vmax.f32 %v1776, %v1777
    %v1779 = vsel %vm1750, %v1746, -inf
    %v1780 = vrot.slane %v1779, 4
    %v1781 = vmax.f32 %v1779, %v1780
    %v1782 = vrot.slane %v1781, 2
    %v1783 = vmax.f32 %v1781, %v1782
    %v1784 = vrot.slane %v1783, 1
    %v1785 = vmax.f32 %v1783, %v1784
    %v1786 = vsel %vm1750, %v1747, -inf
    %v1787 = vrot.slane %v1786, 4
    %v1788 = vmax.f32 %v1786, %v1787
    %v1789 = vrot.slane %v1788, 2
    %v1790 = vmax.f32 %v1788, %v1789
    %v1791 = vrot.slane %v1790, 1
    %v1792 = vmax.f32 %v1790, %v1791
    %v1793 = vsel %vm1750, %v1748, -inf
    %v1794 = vrot.slane %v1793, 4
    %v1795 = vmax.f32 %v1793, %v1794
    %v1796 = vrot.slane %v1795, 2
    %v1797 = vmax.f32 %v1795, %v1796
    %v1798 = vrot.slane %v1797, 1
    %v1799 = vmax.f32 %v1797, %v1798
    %v1800 = vsel %vm1750, %v1749, -inf
    %v1801 = vrot.slane %v1800, 4
    %v1802 = vmax.f32 %v1800, %v1801
    %v1803 = vrot.slane %v1802, 2
    %v1804 = vmax.f32 %v1802, %v1803
    %v1805 = vrot.slane %v1804, 1
    %v1806 = vmax.f32 %v1804, %v1805
    %v1807 = vpack.c.bf16 %v1757, %v1757
    %v1808 = vpack.c.bf16 %v1764, %v1764
    %v1809 = vpack.c.bf16 %v1771, %v1771
    %v1810 = vpack.c.bf16 %v1778, %v1778
    %v1811 = vpack.c.bf16 %v1785, %v1785
    %v1812 = vpack.c.bf16 %v1792, %v1792
    %v1813 = vpack.c.bf16 %v1799, %v1799
    %v1814 = vpack.c.bf16 %v1806, %v1806
    %s1815 = scalar_lea.vmem [#allocation10], 128
    %v1816 = vld [vmem:[%s1815] sm:$0xf]
    %v1817 = vld [vmem:[%s1815 + $0x4] sm:$0xf]
    %v1818 = vld [vmem:[%s1815 + $0x8] sm:$0xf]
    %v1819 = vld [vmem:[%s1815 + $0xc] sm:$0xf]
    %v1820 = vld [vmem:[%s1815 + $0x10] sm:$0xf]
    %v1821 = vld [vmem:[%s1815 + $0x14] sm:$0xf]
    %v1822 = vld [vmem:[%s1815 + $0x18] sm:$0xf]
    %v1823 = vld [vmem:[%s1815 + $0x1c] sm:$0xf]
    %v1824 = vld [vmem:[%s1815 + $0x20] sm:$0xf]
    %v1825 = vld [vmem:[%s1815 + $0x24] sm:$0xf]
    %v1826 = vld [vmem:[%s1815 + $0x28] sm:$0xf]
    %v1827 = vld [vmem:[%s1815 + $0x2c] sm:$0xf]
    %v1828 = vld [vmem:[%s1815 + $0x30] sm:$0xf]
    %v1829 = vld [vmem:[%s1815 + $0x34] sm:$0xf]
    %v1830 = vld [vmem:[%s1815 + $0x38] sm:$0xf]
    %v1831 = vld [vmem:[%s1815 + $0x3c] sm:$0xf]
    %v1840 = vunpack.c.l.b16 %v1807
    %v1841 = vunpack.c.l.b16 %v1808
    %v1842 = vunpack.c.l.b16 %v1809
    %v1843 = vunpack.c.l.b16 %v1810
    %v1844 = vunpack.c.l.b16 %v1811
    %v1845 = vunpack.c.l.b16 %v1812
    %v1846 = vunpack.c.l.b16 %v1813
    %v1847 = vunpack.c.l.b16 %v1814
    %v1848 = vsel %vm1415, %v1841, %v1840
    %v1849 = vsel %vm1417, %v1842, %v1848
    %v1850 = vsel %vm1419, %v1843, %v1849
    %v1851 = vsel %vm1421, %v1844, %v1850
    %v1852 = vsel %vm1423, %v1845, %v1851
    %v1853 = vsel %vm1425, %v1846, %v1852
    %v1854 = vsel %vm1427, %v1847, %v1853
    %v1855 = vpack.c.b16 %v1854, %v1854
    %v1873 = vunpack.c.l.b16 %v1816
    %v1874 = vunpack.c.l.b16 %v1817
    %v1875 = vunpack.c.l.b16 %v1818
    %v1876 = vunpack.c.l.b16 %v1819
    %v1877 = vunpack.c.l.b16 %v1820
    %v1878 = vunpack.c.l.b16 %v1821
    %v1879 = vunpack.c.l.b16 %v1822
    %v1880 = vunpack.c.l.b16 %v1823
    %v1881 = vunpack.c.l.b16 %v1824
    %v1882 = vunpack.c.l.b16 %v1825
    %v1883 = vunpack.c.l.b16 %v1826
    %v1884 = vunpack.c.l.b16 %v1827
    %v1885 = vunpack.c.l.b16 %v1828
    %v1886 = vunpack.c.l.b16 %v1829
    %v1887 = vunpack.c.l.b16 %v1830
    %v1888 = vunpack.c.l.b16 %v1831
    %v1889 = vpack.c.b16 %v1874, %v1873
    %v1890 = vpack.c.b16 %v1876, %v1875
    %v1891 = vpack.c.b16 %v1878, %v1877
    %v1892 = vpack.c.b16 %v1880, %v1879
    %v1893 = vpack.c.b16 %v1882, %v1881
    %v1894 = vpack.c.b16 %v1884, %v1883
    %v1895 = vpack.c.b16 %v1886, %v1885
    %v1896 = vpack.c.b16 %v1888, %v1887
    %1905 = vmatprep.subr.bf16.mxu0 0
    %1906 = vmatpush1.bf16.msra.mxu0 %v1889
    %1907 = vmatprep.subr.bf16.mxu0 0
    %1908 = vmatpush1.bf16.msra.mxu0 %v1890
    %1909 = vmatprep.subr.bf16.mxu0 0
    %1910 = vmatpush1.bf16.msra.mxu0 %v1891
    %1911 = vmatprep.subr.bf16.mxu0 0
    %1912 = vmatpush1.bf16.msra.mxu0 %v1892
    %1913 = vmatprep.subr.bf16.mxu0 0
    %1914 = vmatpush1.bf16.msra.mxu0 %v1893
    %1915 = vmatprep.subr.bf16.mxu0 0
    %1916 = vmatpush1.bf16.msra.mxu0 %v1894
    %1917 = vmatprep.subr.bf16.mxu0 0
    %1918 = vmatpush1.bf16.msra.mxu0 %v1895
    %1919 = vmatprep.subr.bf16.mxu0 0
    %1920 = vmatpush1.bf16.msra.mxu0 %v1896
    %1921 = vmatprep.subr.bf16.mxu0 0
    %1922 = vmatpush1.bf16.msra.mxu0 0
    %1923 = vmatprep.subr.bf16.mxu0 0
    %1924 = vmatpush1.bf16.msra.mxu0 0
    %1925 = vmatprep.subr.bf16.mxu0 0
    %1926 = vmatpush1.bf16.msra.mxu0 0
    %1927 = vmatprep.subr.bf16.mxu0 0
    %1928 = vmatpush1.bf16.msra.mxu0 0
    %1929 = vmatprep.subr.bf16.mxu0 0
    %1930 = vmatpush1.bf16.msra.mxu0 0
    %1931 = vmatprep.subr.bf16.mxu0 0
    %1932 = vmatpush1.bf16.msra.mxu0 0
    %1933 = vmatprep.subr.bf16.mxu0 0
    %1934 = vmatpush1.bf16.msra.mxu0 0
    %1935 = vmatprep.subr.bf16.mxu0 0
    %1936 = vmatpush1.bf16.msra.mxu0 0
    %1937 = vmatprep.mubr.bf16.mxu0 0
    %1938 = vmatmul.mubr.bf16.gmra.mrb[0].mxu0 %v1855
    %v1939 = vpop.f32.mrb[0].mxu0
    %v1940 = vadd.f32 0.0, %v1939
    %v1941 = vpop.f32.mrb[0].mxu0
    %v1942 = vpop.f32.mrb[0].mxu0
    %v1943 = vpop.f32.mrb[0].mxu0
    %1944 = vdwg.mxu0
    %v1945 = vadd.f32 %v1627, %v1940
    %v1946 = vld [vmem:[#allocation11] sm:$0x1]
    %v1948 = vlaneseq
    %v1949 = vshrl.u32 %v1948, 7
    %v1950 = vsub.s32 0, %v1949
    %v1951 = vrot.slane %v1946, %v1950
    %v1953 = vadd.f32 %v1945, %v1951
    %1954 = vst [vmem:[#allocation13] sm:$0xff] %v1953
    // Predicated region
    $region50: #{tpu_custom_call.1} parent=1 // pred_check
      _
    $region51: #{tpu_custom_call.1} parent=1 // pred_check_branch
      %1956 = sbr.rel (0) target = $region53
    $region52: #{tpu_custom_call.1} parent=1 // pred_region
      %s1958 = ssub.s32 128, 128
      %1959 = vsyncadd [#allocation4], %s1958
      %s1961 = sshll.u32 [#allocation13], 4
      %s1962 = int_to_ptr.vmem [resolvable:$true] %s1961
      %1964 = dma.vmem_to_hbm [thread:$0]  %s1962, 128, %s6, [#allocation4]
    $region53: #{tpu_custom_call.1} parent=1 // pred_fallthru
      _
    // Predicated region
    $region54: #{tpu_custom_call.1} parent=1 // pred_check
      _
    $region55: #{tpu_custom_call.1} parent=1 // pred_check_branch
      %1966 = sbr.rel (0) target = $region57
    $region56: #{tpu_custom_call.1} parent=1 // pred_region
      %1967 = dma.done [#allocation4], 128
    $region57: #{tpu_custom_call.1} parent=1 // pred_fallthru
      _
    %1968 = vsyncpa [#allocation3], 1
    %1969 = vsyncpa [#allocation6], 1
    %1970 = vsyncpa [#allocation9], 1
    %1971 = vsyncpa [#allocation12], 1
    %1972 = vsyncpa [#allocation4], 1

</llo_original>
